<compile_context>
chip_gen: v7x
topology: tpu7x:2x2x1
jax: 0.10.0
libtpu: 0.0.40
codegen_flags: <defaults>
</compile_context>

<pallas_src>
import functools

import jax
import jax.numpy as jnp
from jax.experimental import pallas as pl
from jax.experimental.pallas import tpu as pltpu


def _round_up(x, m):
    return (x + m - 1) // m * m


def _pad_last(a, target):
    pad = target - a.shape[-1]
    if pad == 0:
        return a
    widths = [(0, 0)] * (a.ndim - 1) + [(0, pad)]
    return jnp.pad(a, widths)


def combined_kernel(x1_ref, x2_ref, x3_ref,
                    w1_ref, b1_ref, w2_ref, b2_ref, w3e_ref,
                    fw1_ref, fw2_ref, fbe_ref,
                    out_ref,
                    s1_ref, s2_ref, s3_ref,
                    *, hw, hw_chunk, inv_hw, lane_accum, mask_tail):
    j = pl.program_id(1)
    nj = pl.num_programs(1)

    @pl.when(j == 0)
    def _init():
        s1_ref[...] = jnp.zeros_like(s1_ref)
        s2_ref[...] = jnp.zeros_like(s2_ref)
        s3_ref[...] = jnp.zeros_like(s3_ref)

    def accum(x_ref, s_ref):
        x = x_ref[...]                                   # (Bt, C, hw_chunk) f32
        if mask_tail:
            # zero out-of-range pixels of the (possibly partial) last chunk
            col = jax.lax.broadcasted_iota(jnp.int32, x.shape, dimension=2)
            valid = hw - j * hw_chunk
            x = jnp.where(col < valid, x, 0.0)
        if lane_accum:
            # lane-wise accumulation: aligned 128-lane sub-slices added on the
            # VPU; the one cross-lane reduce is deferred to the finalize step.
            acc = x[:, :, 0:128]
            for k in range(1, hw_chunk // 128):
                acc = acc + x[:, :, k * 128:(k + 1) * 128]
            s_ref[...] += acc
        else:
            # single full-HW chunk (HW not a multiple of 128): one-time reduce
            s_ref[...] += jnp.sum(x, axis=-1, keepdims=True)

    accum(x1_ref, s1_ref)
    accum(x2_ref, s2_ref)
    accum(x3_ref, s3_ref)

    @pl.when(j == nj - 1)
    def _finalize():
        # global-average-pool results, f32
        p1 = jnp.sum(s1_ref[...], axis=-1) * inv_hw      # (Bt, C)
        p2 = jnp.sum(s2_ref[...], axis=-1) * inv_hw
        p3 = jnp.sum(s3_ref[...], axis=-1) * inv_hw

        # stand-in submodel heads (GAP already done above), f32 matmuls
        lat1 = jnp.dot(p1, w1_ref[...],
                       preferred_element_type=jnp.float32) + b1_ref[...]
        lat2 = jnp.dot(p2, w2_ref[...],
                       preferred_element_type=jnp.float32) + b2_ref[...]

        # decomposed concat+fc; model3's width-1 head is pre-folded into w3e
        out = (jnp.dot(lat1, fw1_ref[...], preferred_element_type=jnp.float32)
               + jnp.dot(lat2, fw2_ref[...], preferred_element_type=jnp.float32)
               + jnp.dot(p3, w3e_ref[...], preferred_element_type=jnp.float32)
               + fbe_ref[...])                           # (Bt, NCpad)
        out_ref[...] = out.astype(out_ref.dtype)


def combined_resnet18_forward(x1, x2, x3, params, num_classes,
                              *, b_tile_max=256, hw_chunk_max=2048,
                              act_vmem_budget=24 << 20):
    """x1/x2/x3: (B, C, H, W) float32 (NCHW, matching PyTorch)."""
    (w1, b1, w2, b2, w3, b3, fw1, fw2, fw3, fb) = params
    B, C, H, W = x1.shape
    HW = H * W
    d1, d2 = w1.shape[1], w2.shape[1]

    assert hw_chunk_max % 128 == 0, "hw_chunk_max must be a multiple of 128"

    # ---- fold the width-1 model3 head into the fc weight / bias (f32) ----
    w3_eff = w3 @ fw3                      # (C, NC)
    fb_eff = fb + b3 @ fw3                 # (1, NC)

    # ---- lane-dense output: pad num_classes up to a multiple of 128 ----
    nc_pad = _round_up(num_classes, 128)
    fw1_p = _pad_last(fw1, nc_pad)
    fw2_p = _pad_last(fw2, nc_pad)
    w3e_p = _pad_last(w3_eff, nc_pad)
    fbe_p = _pad_last(fb_eff, nc_pad)

    # ---- spatial chunking: no activation padding / casting in HBM ----
    if HW <= hw_chunk_max:
        hw_chunk = HW                      # full-extent last dim: always legal
    else:
        hw_chunk = hw_chunk_max            # multiple of 128; tail masked in-kernel
    n_hw = pl.cdiv(HW, hw_chunk)
    lane_accum = (hw_chunk % 128 == 0)
    acc_lanes = 128 if lane_accum else 1
    mask_tail = (HW % hw_chunk) != 0

    # ---- batch tile sized from a VMEM activation budget ----
    # 3 inputs x 2 pipeline buffers x (b_tile, C, hw_chunk) f32, using the
    # padded-in-VMEM dims (C -> mult of 8, hw_chunk -> mult of 128).
    per_row_bytes = 3 * 2 * _round_up(C, 8) * _round_up(hw_chunk, 128) * 4
    b_tile = max(8, min(b_tile_max, act_vmem_budget // per_row_bytes))
    b_tile = (b_tile // 8) * 8
    if B <= b_tile:
        b_tile = B                         # full-extent batch block, 1 batch step
    n_b = pl.cdiv(B, b_tile)
    # NOTE: on v7x (2 TCs) megacore only engages when n_b >= 2; for tiny B the
    # whole problem is far below a single core's roofline anyway.

    grid = (n_b, n_hw)

    # ---- VMEM accounting -> per-call vmem limit with headroom ----
    def _blk_bytes(shape):
        dims = list(shape)
        if len(dims) >= 2:
            dims[-2] = _round_up(dims[-2], 8)
        dims[-1] = _round_up(dims[-1], 128)
        n = 1
        for s in dims:
            n *= s
        return n * 4

    act_vmem = 3 * 2 * _blk_bytes((b_tile, C, hw_chunk))
    wgt_vmem = 2 * (_blk_bytes((C, d1)) + _blk_bytes((1, d1))
                    + _blk_bytes((C, d2)) + _blk_bytes((1, d2))
                    + _blk_bytes((C, nc_pad)) + _blk_bytes((d1, nc_pad))
                    + _blk_bytes((d2, nc_pad)) + _blk_bytes((1, nc_pad)))
    out_vmem = 2 * _blk_bytes((b_tile, nc_pad))
    scr_vmem = 3 * _blk_bytes((b_tile, C, acc_lanes))
    vmem_need = act_vmem + wgt_vmem + out_vmem + scr_vmem
    vmem_limit = max(32 << 20, int(vmem_need * 1.25) + (2 << 20))

    # trailing-dim merge only: no HBM copy, no dtype cast
    x1r = x1.reshape(B, C, HW)
    x2r = x2.reshape(B, C, HW)
    x3r = x3.reshape(B, C, HW)

    x_spec = pl.BlockSpec((b_tile, C, hw_chunk), lambda i, j: (i, 0, j))
    # weights/biases: same block every grid step -> VMEM resident, no re-DMA
    w1_spec = pl.BlockSpec((C, d1), lambda i, j: (0, 0))
    b1_spec = pl.BlockSpec((1, d1), lambda i, j: (0, 0))
    w2_spec = pl.BlockSpec((C, d2), lambda i, j: (0, 0))
    b2_spec = pl.BlockSpec((1, d2), lambda i, j: (0, 0))
    w3e_spec = pl.BlockSpec((C, nc_pad), lambda i, j: (0, 0))
    fw1_spec = pl.BlockSpec((d1, nc_pad), lambda i, j: (0, 0))
    fw2_spec = pl.BlockSpec((d2, nc_pad), lambda i, j: (0, 0))
    fbe_spec = pl.BlockSpec((1, nc_pad), lambda i, j: (0, 0))
    out_spec = pl.BlockSpec((b_tile, nc_pad), lambda i, j: (i, 0))

    kernel = functools.partial(
        combined_kernel,
        hw=HW, hw_chunk=hw_chunk, inv_hw=1.0 / HW,
        lane_accum=lane_accum, mask_tail=mask_tail)

    out_padded = pl.pallas_call(
        kernel,
        out_shape=jax.ShapeDtypeStruct((B, nc_pad), jnp.float32),
        grid_spec=pltpu.PrefetchScalarGridSpec(
            num_scalar_prefetch=0,
            grid=grid,
            in_specs=[x_spec, x_spec, x_spec,
                      w1_spec, b1_spec, w2_spec, b2_spec, w3e_spec,
                      fw1_spec, fw2_spec, fbe_spec],
            out_specs=out_spec,
            scratch_shapes=[pltpu.VMEM((b_tile, C, acc_lanes), jnp.float32)] * 3,
        ),
        compiler_params=pltpu.CompilerParams(
            dimension_semantics=("parallel", "arbitrary"),
            vmem_limit_bytes=vmem_limit,
        ),
    )(x1r, x2r, x3r,
      w1.astype(jnp.float32), b1.astype(jnp.float32),
      w2.astype(jnp.float32), b2.astype(jnp.float32),
      w3e_p.astype(jnp.float32),
      fw1_p.astype(jnp.float32), fw2_p.astype(jnp.float32),
      fbe_p.astype(jnp.float32))

    return out_padded[:, :num_classes]


def init_params(key, C, num_classes):
    ks = jax.random.split(key, 10)
    d1, d2, d3 = 512, 512, 1          # latent dims implied by Linear(512*2 + 1, NC)
    scale = 0.02
    w1 = scale * jax.random.normal(ks[0], (C, d1), jnp.float32)
    b1 = scale * jax.random.normal(ks[1], (1, d1), jnp.float32)
    w2 = scale * jax.random.normal(ks[2], (C, d2), jnp.float32)
    b2 = scale * jax.random.normal(ks[3], (1, d2), jnp.float32)
    w3 = scale * jax.random.normal(ks[4], (C, d3), jnp.float32)
    b3 = scale * jax.random.normal(ks[5], (1, d3), jnp.float32)
    fw1 = scale * jax.random.normal(ks[6], (d1, num_classes), jnp.float32)
    fw2 = scale * jax.random.normal(ks[7], (d2, num_classes), jnp.float32)
    fw3 = scale * jax.random.normal(ks[8], (d3, num_classes), jnp.float32)
    fb = scale * jax.random.normal(ks[9], (1, num_classes), jnp.float32)
    return (w1, b1, w2, b2, w3, b3, fw1, fw2, fw3, fb)


def reference_forward(x1, x2, x3, params):
    """Pure-JAX f32 reference matching the PyTorch semantics (concat + fc)."""
    (w1, b1, w2, b2, w3, b3, fw1, fw2, fw3, fb) = params
    lat1 = jnp.mean(x1, axis=(2, 3)) @ w1 + b1
    lat2 = jnp.mean(x2, axis=(2, 3)) @ w2 + b2
    lat3 = jnp.mean(x3, axis=(2, 3)) @ w3 + b3
    combined = jnp.concatenate([lat1, lat2, lat3], axis=1)        # (B, 1025)
    fc_w = jnp.concatenate([fw1, fw2, fw3], axis=0)               # (1025, NC)
    return combined @ fc_w + fb


if __name__ == "__main__":
    B, C, H, W = 2, 4, 16, 16
    num_classes = 10

    key = jax.random.PRNGKey(0)
    k1, k2, k3, kp = jax.random.split(key, 4)
    x1 = jax.random.normal(k1, (B, C, H, W), jnp.float32)
    x2 = jax.random.normal(k2, (B, C, H, W), jnp.float32)
    x3 = jax.random.normal(k3, (B, C, H, W), jnp.float32)
    params = init_params(kp, C, num_classes)

    out = combined_resnet18_forward(x1, x2, x3, params, num_classes)
    out = jax.block_until_ready(out)

    ref = reference_forward(x1, x2, x3, params)
    assert out.shape == (B, num_classes)
    # all-f32 math; tolerance covers MXU default-precision / summation-order diffs
    assert jnp.allclose(out, ref, atol=1e-2, rtol=1e-2), (
        float(jnp.max(jnp.abs(out - ref))))

    print("KERNEL_OK")
</pallas_src>

<mosaic_0001>
module attributes {stable_mosaic.version = 11 : i64} {
  func.func @combined_kernel(%arg0: i32, %arg1: i32, %arg2: memref<2x4x256xf32, #tpu.memory_space<vmem>>, %arg3: memref<2x4x256xf32, #tpu.memory_space<vmem>>, %arg4: memref<2x4x256xf32, #tpu.memory_space<vmem>>, %arg5: memref<4x512xf32, #tpu.memory_space<vmem>>, %arg6: memref<1x512xf32, #tpu.memory_space<vmem>>, %arg7: memref<4x512xf32, #tpu.memory_space<vmem>>, %arg8: memref<1x512xf32, #tpu.memory_space<vmem>>, %arg9: memref<4x128xf32, #tpu.memory_space<vmem>>, %arg10: memref<512x128xf32, #tpu.memory_space<vmem>>, %arg11: memref<512x128xf32, #tpu.memory_space<vmem>>, %arg12: memref<1x128xf32, #tpu.memory_space<vmem>>, %arg13: memref<2x128xf32, #tpu.memory_space<vmem>>, %arg14: memref<2x4x128xf32, #tpu.memory_space<vmem>>, %arg15: memref<2x4x128xf32, #tpu.memory_space<vmem>>, %arg16: memref<2x4x128xf32, #tpu.memory_space<vmem>>) attributes {dimension_semantics = [#tpu.dimension_semantics<parallel>, #tpu.dimension_semantics<arbitrary>], iteration_bounds = array<i64: 1, 1>, scalar_prefetch = 0 : i64, scratch_operands = 3 : i64, tpu.core_type = #tpu.core_type<tc>, window_params = [{transform_indices = @transform_0, window_bounds = array<i64: 2, 4, 256>}, {transform_indices = @transform_1, window_bounds = array<i64: 2, 4, 256>}, {transform_indices = @transform_2, window_bounds = array<i64: 2, 4, 256>}, {pipeline_mode = #tpu.pipeline_mode<synchronous>, transform_indices = @transform_3, window_bounds = array<i64: 4, 512>}, {pipeline_mode = #tpu.pipeline_mode<synchronous>, transform_indices = @transform_4, window_bounds = array<i64: 1, 512>}, {pipeline_mode = #tpu.pipeline_mode<synchronous>, transform_indices = @transform_5, window_bounds = array<i64: 4, 512>}, {pipeline_mode = #tpu.pipeline_mode<synchronous>, transform_indices = @transform_6, window_bounds = array<i64: 1, 512>}, {pipeline_mode = #tpu.pipeline_mode<synchronous>, transform_indices = @transform_7, window_bounds = array<i64: 4, 128>}, {pipeline_mode = #tpu.pipeline_mode<synchronous>, transform_indices = @transform_8, window_bounds = array<i64: 512, 128>}, {pipeline_mode = #tpu.pipeline_mode<synchronous>, transform_indices = @transform_9, window_bounds = array<i64: 512, 128>}, {pipeline_mode = #tpu.pipeline_mode<synchronous>, transform_indices = @transform_10, window_bounds = array<i64: 1, 128>}, {transform_indices = @transform_11, window_bounds = array<i64: 2, 128>}]} {
    %c0_i32 = arith.constant 0 : i32
    %0 = arith.cmpi eq, %arg1, %c0_i32 : i32
    %1 = arith.extui %0 : i1 to i32
    %c0_i32_0 = arith.constant 0 : i32
    %2 = arith.cmpi ne, %1, %c0_i32_0 : i32
    scf.if %2 {
      %cst = arith.constant 0.000000e+00 : f32
      %27 = vector.broadcast %cst : f32 to vector<2x4x128xf32>
      %c0_29 = arith.constant 0 : index
      %c0_30 = arith.constant 0 : index
      %c0_31 = arith.constant 0 : index
      %28 = vector.load %arg14[%c0_29, %c0_30, %c0_31] : memref<2x4x128xf32, #tpu.memory_space<vmem>>, vector<2x4x128xf32>
      tpu.vector_store %arg14[%c0_29, %c0_30, %c0_31], %27 {strides = array<i32>} : memref<2x4x128xf32, #tpu.memory_space<vmem>>, vector<2x4x128xf32>,
      %cst_32 = arith.constant 0.000000e+00 : f32
      %29 = vector.broadcast %cst_32 : f32 to vector<2x4x128xf32>
      %c0_33 = arith.constant 0 : index
      %c0_34 = arith.constant 0 : index
      %c0_35 = arith.constant 0 : index
      %30 = vector.load %arg15[%c0_33, %c0_34, %c0_35] : memref<2x4x128xf32, #tpu.memory_space<vmem>>, vector<2x4x128xf32>
      tpu.vector_store %arg15[%c0_33, %c0_34, %c0_35], %29 {strides = array<i32>} : memref<2x4x128xf32, #tpu.memory_space<vmem>>, vector<2x4x128xf32>,
      %cst_36 = arith.constant 0.000000e+00 : f32
      %31 = vector.broadcast %cst_36 : f32 to vector<2x4x128xf32>
      %c0_37 = arith.constant 0 : index
      %c0_38 = arith.constant 0 : index
      %c0_39 = arith.constant 0 : index
      %32 = vector.load %arg16[%c0_37, %c0_38, %c0_39] : memref<2x4x128xf32, #tpu.memory_space<vmem>>, vector<2x4x128xf32>
      tpu.vector_store %arg16[%c0_37, %c0_38, %c0_39], %31 {strides = array<i32>} : memref<2x4x128xf32, #tpu.memory_space<vmem>>, vector<2x4x128xf32>,
    } else {
    }
    %c0 = arith.constant 0 : index
    %c0_1 = arith.constant 0 : index
    %c0_2 = arith.constant 0 : index
    %3 = vector.load %arg2[%c0, %c0_1, %c0_2] : memref<2x4x256xf32, #tpu.memory_space<vmem>>, vector<2x4x256xf32>
    %4 = vector.extract_strided_slice %3 {offsets = [0, 0, 0], sizes = [2, 4, 128], strides = [1, 1, 1]} : vector<2x4x256xf32> to vector<2x4x128xf32>
    %5 = vector.extract_strided_slice %3 {offsets = [0, 0, 128], sizes = [2, 4, 128], strides = [1, 1, 1]} : vector<2x4x256xf32> to vector<2x4x128xf32>
    %6 = arith.addf %4, %5 : vector<2x4x128xf32>
    %c0_3 = arith.constant 0 : index
    %c0_4 = arith.constant 0 : index
    %c0_5 = arith.constant 0 : index
    %7 = vector.load %arg14[%c0_3, %c0_4, %c0_5] : memref<2x4x128xf32, #tpu.memory_space<vmem>>, vector<2x4x128xf32>
    %8 = arith.addf %7, %6 : vector<2x4x128xf32>
    %c0_6 = arith.constant 0 : index
    %c0_7 = arith.constant 0 : index
    %c0_8 = arith.constant 0 : index
    %9 = vector.load %arg14[%c0_6, %c0_7, %c0_8] : memref<2x4x128xf32, #tpu.memory_space<vmem>>, vector<2x4x128xf32>
    tpu.vector_store %arg14[%c0_6, %c0_7, %c0_8], %8 {strides = array<i32>} : memref<2x4x128xf32, #tpu.memory_space<vmem>>, vector<2x4x128xf32>,
    %c0_9 = arith.constant 0 : index
    %c0_10 = arith.constant 0 : index
    %c0_11 = arith.constant 0 : index
    %10 = vector.load %arg3[%c0_9, %c0_10, %c0_11] : memref<2x4x256xf32, #tpu.memory_space<vmem>>, vector<2x4x256xf32>
    %11 = vector.extract_strided_slice %10 {offsets = [0, 0, 0], sizes = [2, 4, 128], strides = [1, 1, 1]} : vector<2x4x256xf32> to vector<2x4x128xf32>
    %12 = vector.extract_strided_slice %10 {offsets = [0, 0, 128], sizes = [2, 4, 128], strides = [1, 1, 1]} : vector<2x4x256xf32> to vector<2x4x128xf32>
    %13 = arith.addf %11, %12 : vector<2x4x128xf32>
    %c0_12 = arith.constant 0 : index
    %c0_13 = arith.constant 0 : index
    %c0_14 = arith.constant 0 : index
    %14 = vector.load %arg15[%c0_12, %c0_13, %c0_14] : memref<2x4x128xf32, #tpu.memory_space<vmem>>, vector<2x4x128xf32>
    %15 = arith.addf %14, %13 : vector<2x4x128xf32>
    %c0_15 = arith.constant 0 : index
    %c0_16 = arith.constant 0 : index
    %c0_17 = arith.constant 0 : index
    %16 = vector.load %arg15[%c0_15, %c0_16, %c0_17] : memref<2x4x128xf32, #tpu.memory_space<vmem>>, vector<2x4x128xf32>
    tpu.vector_store %arg15[%c0_15, %c0_16, %c0_17], %15 {strides = array<i32>} : memref<2x4x128xf32, #tpu.memory_space<vmem>>, vector<2x4x128xf32>,
    %c0_18 = arith.constant 0 : index
    %c0_19 = arith.constant 0 : index
    %c0_20 = arith.constant 0 : index
    %17 = vector.load %arg4[%c0_18, %c0_19, %c0_20] : memref<2x4x256xf32, #tpu.memory_space<vmem>>, vector<2x4x256xf32>
    %18 = vector.extract_strided_slice %17 {offsets = [0, 0, 0], sizes = [2, 4, 128], strides = [1, 1, 1]} : vector<2x4x256xf32> to vector<2x4x128xf32>
    %19 = vector.extract_strided_slice %17 {offsets = [0, 0, 128], sizes = [2, 4, 128], strides = [1, 1, 1]} : vector<2x4x256xf32> to vector<2x4x128xf32>
    %20 = arith.addf %18, %19 : vector<2x4x128xf32>
    %c0_21 = arith.constant 0 : index
    %c0_22 = arith.constant 0 : index
    %c0_23 = arith.constant 0 : index
    %21 = vector.load %arg16[%c0_21, %c0_22, %c0_23] : memref<2x4x128xf32, #tpu.memory_space<vmem>>, vector<2x4x128xf32>
    %22 = arith.addf %21, %20 : vector<2x4x128xf32>
    %c0_24 = arith.constant 0 : index
    %c0_25 = arith.constant 0 : index
    %c0_26 = arith.constant 0 : index
    %23 = vector.load %arg16[%c0_24, %c0_25, %c0_26] : memref<2x4x128xf32, #tpu.memory_space<vmem>>, vector<2x4x128xf32>
    tpu.vector_store %arg16[%c0_24, %c0_25, %c0_26], %22 {strides = array<i32>} : memref<2x4x128xf32, #tpu.memory_space<vmem>>, vector<2x4x128xf32>,
    %c0_i32_27 = arith.constant 0 : i32
    %24 = arith.cmpi eq, %arg1, %c0_i32_27 : i32
    %25 = arith.extui %24 : i1 to i32
    %c0_i32_28 = arith.constant 0 : i32
    %26 = arith.cmpi ne, %25, %c0_i32_28 : i32
    scf.if %26 {
      %c0_29 = arith.constant 0 : index
      %c0_30 = arith.constant 0 : index
      %c0_31 = arith.constant 0 : index
      %27 = vector.load %arg14[%c0_29, %c0_30, %c0_31] : memref<2x4x128xf32, #tpu.memory_space<vmem>>, vector<2x4x128xf32>
      %cst = arith.constant dense<0.000000e+00> : vector<2x4xf32>
      %28 = vector.multi_reduction <add>, %27, %cst [2] : vector<2x4x128xf32> to vector<2x4xf32>
      %cst_32 = arith.constant 3.906250e-03 : f32
      %29 = vector.broadcast %cst_32 : f32 to vector<2x4xf32>
      %30 = arith.mulf %28, %29 : vector<2x4xf32>
      %c0_33 = arith.constant 0 : index
      %c0_34 = arith.constant 0 : index
      %c0_35 = arith.constant 0 : index
      %31 = vector.load %arg15[%c0_33, %c0_34, %c0_35] : memref<2x4x128xf32, #tpu.memory_space<vmem>>, vector<2x4x128xf32>
      %cst_36 = arith.constant dense<0.000000e+00> : vector<2x4xf32>
      %32 = vector.multi_reduction <add>, %31, %cst_36 [2] : vector<2x4x128xf32> to vector<2x4xf32>
      %cst_37 = arith.constant 3.906250e-03 : f32
      %33 = vector.broadcast %cst_37 : f32 to vector<2x4xf32>
      %34 = arith.mulf %32, %33 : vector<2x4xf32>
      %c0_38 = arith.constant 0 : index
      %c0_39 = arith.constant 0 : index
      %c0_40 = arith.constant 0 : index
      %35 = vector.load %arg16[%c0_38, %c0_39, %c0_40] : memref<2x4x128xf32, #tpu.memory_space<vmem>>, vector<2x4x128xf32>
      %cst_41 = arith.constant dense<0.000000e+00> : vector<2x4xf32>
      %36 = vector.multi_reduction <add>, %35, %cst_41 [2] : vector<2x4x128xf32> to vector<2x4xf32>
      %cst_42 = arith.constant 3.906250e-03 : f32
      %37 = vector.broadcast %cst_42 : f32 to vector<2x4xf32>
      %38 = arith.mulf %36, %37 : vector<2x4xf32>
      %c0_43 = arith.constant 0 : index
      %c0_44 = arith.constant 0 : index
      %39 = vector.load %arg5[%c0_43, %c0_44] : memref<4x512xf32, #tpu.memory_space<vmem>>, vector<4x512xf32>
      %cst_45 = arith.constant dense<0.000000e+00> : vector<2x512xf32>
      %40 = tpu.matmul %30, %39, %cst_45 {dimension_numbers = #tpu.dot_dimension_numbers<[1], [0], [0], [1], [0, 0, 1, 1], [], []>} : vector<2x4xf32>, vector<4x512xf32>, vector<2x512xf32> -> vector<2x512xf32>
      %c0_46 = arith.constant 0 : index
      %c0_47 = arith.constant 0 : index
      %41 = vector.load %arg6[%c0_46, %c0_47] : memref<1x512xf32, #tpu.memory_space<vmem>>, vector<1x512xf32>
      %42 = vector.broadcast %41 : vector<1x512xf32> to vector<2x512xf32>
      %43 = arith.addf %40, %42 : vector<2x512xf32>
      %c0_48 = arith.constant 0 : index
      %c0_49 = arith.constant 0 : index
      %44 = vector.load %arg7[%c0_48, %c0_49] : memref<4x512xf32, #tpu.memory_space<vmem>>, vector<4x512xf32>
      %cst_50 = arith.constant dense<0.000000e+00> : vector<2x512xf32>
      %45 = tpu.matmul %34, %44, %cst_50 {dimension_numbers = #tpu.dot_dimension_numbers<[1], [0], [0], [1], [0, 0, 1, 1], [], []>} : vector<2x4xf32>, vector<4x512xf32>, vector<2x512xf32> -> vector<2x512xf32>
      %c0_51 = arith.constant 0 : index
      %c0_52 = arith.constant 0 : index
      %46 = vector.load %arg8[%c0_51, %c0_52] : memref<1x512xf32, #tpu.memory_space<vmem>>, vector<1x512xf32>
      %47 = vector.broadcast %46 : vector<1x512xf32> to vector<2x512xf32>
      %48 = arith.addf %45, %47 : vector<2x512xf32>
      %c0_53 = arith.constant 0 : index
      %c0_54 = arith.constant 0 : index
      %49 = vector.load %arg10[%c0_53, %c0_54] : memref<512x128xf32, #tpu.memory_space<vmem>>, vector<512x128xf32>
      %cst_55 = arith.constant dense<0.000000e+00> : vector<2x128xf32>
      %50 = tpu.matmul %43, %49, %cst_55 {dimension_numbers = #tpu.dot_dimension_numbers<[1], [0], [0], [1], [0, 0, 1, 1], [], []>} : vector<2x512xf32>, vector<512x128xf32>, vector<2x128xf32> -> vector<2x128xf32>
      %c0_56 = arith.constant 0 : index
      %c0_57 = arith.constant 0 : index
      %51 = vector.load %arg11[%c0_56, %c0_57] : memref<512x128xf32, #tpu.memory_space<vmem>>, vector<512x128xf32>
      %cst_58 = arith.constant dense<0.000000e+00> : vector<2x128xf32>
      %52 = tpu.matmul %48, %51, %cst_58 {dimension_numbers = #tpu.dot_dimension_numbers<[1], [0], [0], [1], [0, 0, 1, 1], [], []>} : vector<2x512xf32>, vector<512x128xf32>, vector<2x128xf32> -> vector<2x128xf32>
      %53 = arith.addf %50, %52 : vector<2x128xf32>
      %c0_59 = arith.constant 0 : index
      %c0_60 = arith.constant 0 : index
      %54 = vector.load %arg9[%c0_59, %c0_60] : memref<4x128xf32, #tpu.memory_space<vmem>>, vector<4x128xf32>
      %cst_61 = arith.constant dense<0.000000e+00> : vector<2x128xf32>
      %55 = tpu.matmul %38, %54, %cst_61 {dimension_numbers = #tpu.dot_dimension_numbers<[1], [0], [0], [1], [0, 0, 1, 1], [], []>} : vector<2x4xf32>, vector<4x128xf32>, vector<2x128xf32> -> vector<2x128xf32>
      %56 = arith.addf %53, %55 : vector<2x128xf32>
      %c0_62 = arith.constant 0 : index
      %c0_63 = arith.constant 0 : index
      %57 = vector.load %arg12[%c0_62, %c0_63] : memref<1x128xf32, #tpu.memory_space<vmem>>, vector<1x128xf32>
      %58 = vector.broadcast %57 : vector<1x128xf32> to vector<2x128xf32>
      %59 = arith.addf %56, %58 : vector<2x128xf32>
      %c0_64 = arith.constant 0 : index
      %c0_65 = arith.constant 0 : index
      %60 = vector.load %arg13[%c0_64, %c0_65] : memref<2x128xf32, #tpu.memory_space<vmem>>, vector<2x128xf32>
      tpu.vector_store %arg13[%c0_64, %c0_65], %59 {strides = array<i32>} : memref<2x128xf32, #tpu.memory_space<vmem>>, vector<2x128xf32>,
    } else {
    }
    return
  }
  func.func @transform_0(%arg0: i32, %arg1: i32) -> (i32, i32, i32) {
    %c0_i32 = arith.constant 0 : i32
    %c0_i32_0 = arith.constant 0 : i32
    return %arg0, %c0_i32, %arg1 : i32, i32, i32
  }
  func.func @transform_1(%arg0: i32, %arg1: i32) -> (i32, i32, i32) {
    %c0_i32 = arith.constant 0 : i32
    %c0_i32_0 = arith.constant 0 : i32
    return %arg0, %c0_i32, %arg1 : i32, i32, i32
  }
  func.func @transform_2(%arg0: i32, %arg1: i32) -> (i32, i32, i32) {
    %c0_i32 = arith.constant 0 : i32
    %c0_i32_0 = arith.constant 0 : i32
    return %arg0, %c0_i32, %arg1 : i32, i32, i32
  }
  func.func @transform_3(%arg0: i32, %arg1: i32) -> (i32, i32) {
    %c0_i32 = arith.constant 0 : i32
    %c0_i32_0 = arith.constant 0 : i32
    %c0_i32_1 = arith.constant 0 : i32
    return %c0_i32, %c0_i32_0 : i32, i32
  }
  func.func @transform_4(%arg0: i32, %arg1: i32) -> (i32, i32) {
    %c0_i32 = arith.constant 0 : i32
    %c0_i32_0 = arith.constant 0 : i32
    %c0_i32_1 = arith.constant 0 : i32
    return %c0_i32, %c0_i32_0 : i32, i32
  }
  func.func @transform_5(%arg0: i32, %arg1: i32) -> (i32, i32) {
    %c0_i32 = arith.constant 0 : i32
    %c0_i32_0 = arith.constant 0 : i32
    %c0_i32_1 = arith.constant 0 : i32
    return %c0_i32, %c0_i32_0 : i32, i32
  }
  func.func @transform_6(%arg0: i32, %arg1: i32) -> (i32, i32) {
    %c0_i32 = arith.constant 0 : i32
    %c0_i32_0 = arith.constant 0 : i32
    %c0_i32_1 = arith.constant 0 : i32
    return %c0_i32, %c0_i32_0 : i32, i32
  }
  func.func @transform_7(%arg0: i32, %arg1: i32) -> (i32, i32) {
    %c0_i32 = arith.constant 0 : i32
    %c0_i32_0 = arith.constant 0 : i32
    %c0_i32_1 = arith.constant 0 : i32
    return %c0_i32, %c0_i32_0 : i32, i32
  }
  func.func @transform_8(%arg0: i32, %arg1: i32) -> (i32, i32) {
    %c0_i32 = arith.constant 0 : i32
    %c0_i32_0 = arith.constant 0 : i32
    %c0_i32_1 = arith.constant 0 : i32
    return %c0_i32, %c0_i32_0 : i32, i32
  }
  func.func @transform_9(%arg0: i32, %arg1: i32) -> (i32, i32) {
    %c0_i32 = arith.constant 0 : i32
    %c0_i32_0 = arith.constant 0 : i32
    %c0_i32_1 = arith.constant 0 : i32
    return %c0_i32, %c0_i32_0 : i32, i32
  }
  func.func @transform_10(%arg0: i32, %arg1: i32) -> (i32, i32) {
    %c0_i32 = arith.constant 0 : i32
    %c0_i32_0 = arith.constant 0 : i32
    %c0_i32_1 = arith.constant 0 : i32
    return %c0_i32, %c0_i32_0 : i32, i32
  }
  func.func @transform_11(%arg0: i32, %arg1: i32) -> (i32, i32) {
    %c0_i32 = arith.constant 0 : i32
    %c0_i32_0 = arith.constant 0 : i32
    return %arg0, %c0_i32 : i32, i32
  }
}

</mosaic_0001>

<llo_original>
// kernel: tpu_custom_call.1
$region0: #{tpu_custom_call.1}
  #allocation0 [shape = 'u32[]', space=smem, size = 0x4, offset = 0x4, fixed_abs, tag = 'smem constant byte address 0x4 - core index']
  #allocation1 [shape = 'u32[144,128]{1,0:T(1,128)}', space=vmem, size = 0x12000, scoped, tag = 'internal scratch']
  #allocation2 [shape = 'f32[2,4,128]{2,1,0:T(4,128)}', space=vmem, size = 0x1000, scoped, tag = 'scratch operand']
  #allocation3 [shape = 'f32[2,4,128]{2,1,0:T(4,128)}', space=vmem, size = 0x1000, scoped, tag = 'scratch operand']
  #allocation4 [shape = 'f32[2,4,128]{2,1,0:T(4,128)}', space=vmem, size = 0x1000, scoped, tag = 'scratch operand']
  %s0 = inlined_call_operand.hbm [shape: f32[2,4,256], index: 0, kind: input, shape index: {}]
  %s1 = inlined_call_operand.hbm [shape: f32[2,4,256], index: 1, kind: input, shape index: {}]
  %s2 = inlined_call_operand.hbm [shape: f32[2,4,256], index: 2, kind: input, shape index: {}]
  %s3 = inlined_call_operand.hbm [shape: f32[4,512], index: 3, kind: input, shape index: {}]
  %s4 = inlined_call_operand.hbm [shape: f32[1,512], index: 4, kind: input, shape index: {}]
  %s5 = inlined_call_operand.vmem [shape: f32[4,512], index: 5, kind: input, shape index: {}]
  %s6 = inlined_call_operand.vmem [shape: f32[1,512], index: 6, kind: input, shape index: {}]
  %s7 = inlined_call_operand.vmem [shape: f32[4,128], index: 7, kind: input, shape index: {}]
  %s8 = inlined_call_operand.hbm [shape: f32[512,128], index: 8, kind: input, shape index: {}]
  %s9 = inlined_call_operand.hbm [shape: f32[512,128], index: 9, kind: input, shape index: {}]
  %s10 = inlined_call_operand.vmem [shape: f32[1,128], index: 10, kind: input, shape index: {}]
  %s11 = inlined_call_operand.hbm [shape: f32[2,128], index: 11, kind: output, shape index: {}]
  %s12 = sld [smem:[#allocation0]]
  $region90: #{tpu_custom_call.1} parent=0
    _
  %s14 = ssub.s32 1, %s12
  %s15 = scalar_select 0, %s14, %s12
  $region1: #{tpu_custom_call.1} parent=0
    #allocation5 [shape = 'u8[8192]{0}', space=vmem, size = 0x2000, scoped, tag = 'input window, operand 0, single buffered']
    #allocation6 [shape = 's32[1]{0}', space=sflag, size = 0x4, scoped, tag = 'scoped memory for tpu_custom_call.1']
    #allocation7 [shape = 's32[1]{0}', space=sflag, size = 0x4, scoped, tag = 'scoped memory for tpu_custom_call.1']
    #allocation8 [shape = 'u8[8192]{0}', space=vmem, size = 0x2000, scoped, tag = 'input window, operand 1, single buffered']
    #allocation9 [shape = 's32[1]{0}', space=sflag, size = 0x4, scoped, tag = 'scoped memory for tpu_custom_call.1']
    #allocation10 [shape = 'u8[8192]{0}', space=vmem, size = 0x2000, scoped, tag = 'input window, operand 2, single buffered']
    #allocation11 [shape = 'u8[8192]{0}', space=vmem, size = 0x2000, scoped, tag = 'input window, operand 3, single buffered']
    #allocation12 [shape = 's32[1]{0}', space=sflag, size = 0x4, scoped, tag = 'scoped memory for tpu_custom_call.1']
    #allocation13 [shape = 'u8[2048]{0}', space=vmem, size = 0x800, scoped, tag = 'input window, operand 4, single buffered']
    #allocation14 [shape = 'u8[262144]{0}', space=vmem, size = 0x40000, scoped, tag = 'input window, operand 8, single buffered']
    #allocation15 [shape = 's32[1]{0}', space=sflag, size = 0x4, scoped, tag = 'scoped memory for tpu_custom_call.1']
    #allocation16 [shape = 'u8[262144]{0}', space=vmem, size = 0x40000, scoped, tag = 'input window, operand 9, single buffered']
    #allocation17 [shape = 'u8[1024]{0}', space=vmem, size = 0x400, scoped, tag = 'output window, operand 0, single buffered']
    %16 = vsyncpa [#allocation6], 0
    %17 = vsyncpa [#allocation9], 0
    %18 = vsyncpa [#allocation12], 0
    %19 = vsyncpa [#allocation15], 0
    %20 = vsyncpa [#allocation7], 0
    // Predicated region
    $region2: #{tpu_custom_call.1} parent=1 // pred_check
      _
    $region3: #{tpu_custom_call.1} parent=1 // pred_check_branch
      %22 = sbr.rel (0) target = $region5
    $region4: #{tpu_custom_call.1} parent=1 // pred_region
      %s24 = ssub.s32 256, 256
      %25 = vsyncadd [#allocation6], %s24
      %s26 = sshll.u32 [#allocation5], 4
      %s27 = int_to_ptr.vmem [resolvable:$true] %s26
      %32 = dma.hbm_to_vmem [thread:$0]  %s0, 256, %s27, [#allocation6], 128, 128, 8
    $region5: #{tpu_custom_call.1} parent=1 // pred_fallthru
      _
    // Predicated region
    $region6: #{tpu_custom_call.1} parent=1 // pred_check
      _
    $region7: #{tpu_custom_call.1} parent=1 // pred_check_branch
      %34 = sbr.rel (0) target = $region9
    $region8: #{tpu_custom_call.1} parent=1 // pred_region
      %s36 = ssub.s32 256, 256
      %37 = vsyncadd [#allocation9], %s36
      %s38 = sshll.u32 [#allocation8], 4
      %s39 = int_to_ptr.vmem [resolvable:$true] %s38
      %44 = dma.hbm_to_vmem [thread:$0]  %s1, 256, %s39, [#allocation9], 128, 128, 8
    $region9: #{tpu_custom_call.1} parent=1 // pred_fallthru
      _
    // Predicated region
    $region10: #{tpu_custom_call.1} parent=1 // pred_check
      _
    $region11: #{tpu_custom_call.1} parent=1 // pred_check_branch
      %46 = sbr.rel (0) target = $region13
    $region12: #{tpu_custom_call.1} parent=1 // pred_region
      %s48 = ssub.s32 256, 256
      %49 = vsyncadd [#allocation9], %s48
      %s50 = sshll.u32 [#allocation10], 4
      %s51 = int_to_ptr.vmem [resolvable:$true] %s50
      %56 = dma.hbm_to_vmem [thread:$0]  %s2, 256, %s51, [#allocation9], 128, 128, 8
    $region13: #{tpu_custom_call.1} parent=1 // pred_fallthru
      _
    // Predicated region
    $region14: #{tpu_custom_call.1} parent=1 // pred_check
      _
    $region15: #{tpu_custom_call.1} parent=1 // pred_check_branch
      %58 = sbr.rel (0) target = $region17
    $region16: #{tpu_custom_call.1} parent=1 // pred_region
      %s60 = ssub.s32 256, 256
      %61 = vsyncadd [#allocation12], %s60
      %s63 = sshll.u32 [#allocation11], 4
      %s64 = int_to_ptr.vmem [resolvable:$true] %s63
      %66 = dma.hbm_to_vmem [thread:$0]  %s3, 256, %s64, [#allocation12]
    $region17: #{tpu_custom_call.1} parent=1 // pred_fallthru
      _
    // Predicated region
    $region18: #{tpu_custom_call.1} parent=1 // pred_check
      _
    $region19: #{tpu_custom_call.1} parent=1 // pred_check_branch
      %68 = sbr.rel (0) target = $region21
    $region20: #{tpu_custom_call.1} parent=1 // pred_region
      %s70 = ssub.s32 64, 64
      %71 = vsyncadd [#allocation12], %s70
      %s73 = sshll.u32 [#allocation13], 4
      %s74 = int_to_ptr.vmem [resolvable:$true] %s73
      %76 = dma.hbm_to_vmem [thread:$0]  %s4, 64, %s74, [#allocation12]
    $region21: #{tpu_custom_call.1} parent=1 // pred_fallthru
      _
    // Predicated region
    $region22: #{tpu_custom_call.1} parent=1 // pred_check
      _
    $region23: #{tpu_custom_call.1} parent=1 // pred_check_branch
      %78 = sbr.rel (0) target = $region25
    $region24: #{tpu_custom_call.1} parent=1 // pred_region
      _
    $region25: #{tpu_custom_call.1} parent=1 // pred_fallthru
      _
    // Predicated region
    $region26: #{tpu_custom_call.1} parent=1 // pred_check
      _
    $region27: #{tpu_custom_call.1} parent=1 // pred_check_branch
      %80 = sbr.rel (0) target = $region29
    $region28: #{tpu_custom_call.1} parent=1 // pred_region
      _
    $region29: #{tpu_custom_call.1} parent=1 // pred_fallthru
      _
    // Predicated region
    $region30: #{tpu_custom_call.1} parent=1 // pred_check
      _
    $region31: #{tpu_custom_call.1} parent=1 // pred_check_branch
      %82 = sbr.rel (0) target = $region33
    $region32: #{tpu_custom_call.1} parent=1 // pred_region
      _
    $region33: #{tpu_custom_call.1} parent=1 // pred_fallthru
      _
    // Predicated region
    $region34: #{tpu_custom_call.1} parent=1 // pred_check
      _
    $region35: #{tpu_custom_call.1} parent=1 // pred_check_branch
      %84 = sbr.rel (0) target = $region37
    $region36: #{tpu_custom_call.1} parent=1 // pred_region
      %s86 = ssub.s32 8192, 8192
      %87 = vsyncadd [#allocation15], %s86
      %s88 = sshll.u32 [#allocation14], 4
      %s89 = int_to_ptr.vmem [resolvable:$true] %s88
      %94 = dma.hbm_to_vmem [thread:$0]  %s8, 8192, %s89, [#allocation15], 128, 128, 8
    $region37: #{tpu_custom_call.1} parent=1 // pred_fallthru
      _
    // Predicated region
    $region38: #{tpu_custom_call.1} parent=1 // pred_check
      _
    $region39: #{tpu_custom_call.1} parent=1 // pred_check_branch
      %96 = sbr.rel (0) target = $region41
    $region40: #{tpu_custom_call.1} parent=1 // pred_region
      %s98 = ssub.s32 8192, 8192
      %99 = vsyncadd [#allocation15], %s98
      %s100 = sshll.u32 [#allocation16], 4
      %s101 = int_to_ptr.vmem [resolvable:$true] %s100
      %106 = dma.hbm_to_vmem [thread:$0]  %s9, 8192, %s101, [#allocation15], 128, 128, 8
    $region41: #{tpu_custom_call.1} parent=1 // pred_fallthru
      _
    // Predicated region
    $region42: #{tpu_custom_call.1} parent=1 // pred_check
      _
    $region43: #{tpu_custom_call.1} parent=1 // pred_check_branch
      %108 = sbr.rel (0) target = $region45
    $region44: #{tpu_custom_call.1} parent=1 // pred_region
      _
    $region45: #{tpu_custom_call.1} parent=1 // pred_fallthru
      _
    // Predicated region
    $region46: #{tpu_custom_call.1} parent=1 // pred_check
      _
    $region47: #{tpu_custom_call.1} parent=1 // pred_check_branch
      %110 = sbr.rel (0) target = $region49
    $region48: #{tpu_custom_call.1} parent=1 // pred_region
      %111 = dma.done [#allocation6], 256
    $region49: #{tpu_custom_call.1} parent=1 // pred_fallthru
      _
    // Predicated region
    $region50: #{tpu_custom_call.1} parent=1 // pred_check
      _
    $region51: #{tpu_custom_call.1} parent=1 // pred_check_branch
      %113 = sbr.rel (0) target = $region53
    $region52: #{tpu_custom_call.1} parent=1 // pred_region
      %114 = dma.done [#allocation9], 256
    $region53: #{tpu_custom_call.1} parent=1 // pred_fallthru
      _
    // Predicated region
    $region54: #{tpu_custom_call.1} parent=1 // pred_check
      _
    $region55: #{tpu_custom_call.1} parent=1 // pred_check_branch
      %116 = sbr.rel (0) target = $region57
    $region56: #{tpu_custom_call.1} parent=1 // pred_region
      %117 = dma.done [#allocation9], 256
    $region57: #{tpu_custom_call.1} parent=1 // pred_fallthru
      _
    // Predicated region
    $region58: #{tpu_custom_call.1} parent=1 // pred_check
      _
    $region59: #{tpu_custom_call.1} parent=1 // pred_check_branch
      %119 = sbr.rel (0) target = $region61
    $region60: #{tpu_custom_call.1} parent=1 // pred_region
      %120 = dma.done [#allocation12], 256
    $region61: #{tpu_custom_call.1} parent=1 // pred_fallthru
      _
    // Predicated region
    $region62: #{tpu_custom_call.1} parent=1 // pred_check
      _
    $region63: #{tpu_custom_call.1} parent=1 // pred_check_branch
      %122 = sbr.rel (0) target = $region65
    $region64: #{tpu_custom_call.1} parent=1 // pred_region
      %123 = dma.done [#allocation12], 64
    $region65: #{tpu_custom_call.1} parent=1 // pred_fallthru
      _
    // Predicated region
    $region66: #{tpu_custom_call.1} parent=1 // pred_check
      _
    $region67: #{tpu_custom_call.1} parent=1 // pred_check_branch
      %125 = sbr.rel (0) target = $region69
    $region68: #{tpu_custom_call.1} parent=1 // pred_region
      %126 = dma.done [#allocation15], 8192
    $region69: #{tpu_custom_call.1} parent=1 // pred_fallthru
      _
    // Predicated region
    $region70: #{tpu_custom_call.1} parent=1 // pred_check
      _
    $region71: #{tpu_custom_call.1} parent=1 // pred_check_branch
      %128 = sbr.rel (0) target = $region73
    $region72: #{tpu_custom_call.1} parent=1 // pred_region
      %129 = dma.done [#allocation15], 8192
    $region73: #{tpu_custom_call.1} parent=1 // pred_fallthru
      _
    %p130 = scmp.eq.s32.totalorder 0, 0
    // Predicated region
    $region74: #{tpu_custom_call.1} parent=1 // pred_check
      %p131 = pneg %p130
    $region75: #{tpu_custom_call.1} parent=1 // pred_check_branch
      %133 = sbr.rel (%p131) target = $region77
    $region76: #{tpu_custom_call.1} parent=1 // pred_region
      %134 = vst [vmem:[#allocation2] sm:$0xf] 0.0
      %135 = vst [vmem:[#allocation2 + $0x4] sm:$0xf] 0.0
      %136 = vst [vmem:[#allocation3] sm:$0xf] 0.0
      %137 = vst [vmem:[#allocation3 + $0x4] sm:$0xf] 0.0
      %138 = vst [vmem:[#allocation4] sm:$0xf] 0.0
      %139 = vst [vmem:[#allocation4 + $0x4] sm:$0xf] 0.0
    $region77: #{tpu_custom_call.1} parent=1 // pred_fallthru
      _
    %v140 = vld [vmem:[#allocation5] sm:$0xff]
    %v141 = vld [vmem:[#allocation5 + $0x8] sm:$0xff]
    %v144 = vrot.slane %v140, 4
    %v145 = vrot.slane %v141, 4
    %v148 = vadd.f32 %v140, %v144
    %v149 = vadd.f32 %v141, %v145
    %v150 = vld [vmem:[#allocation2] sm:$0xf]
    %v151 = vld [vmem:[#allocation2 + $0x4] sm:$0xf]
    %v152 = vadd.f32 %v150, %v148
    %v153 = vadd.f32 %v151, %v149
    %154 = vst [vmem:[#allocation2] sm:$0xf] %v152
    %155 = vst [vmem:[#allocation2 + $0x4] sm:$0xf] %v153
    %v156 = vld [vmem:[#allocation8] sm:$0xff]
    %v157 = vld [vmem:[#allocation8 + $0x8] sm:$0xff]
    %v160 = vrot.slane %v156, 4
    %v161 = vrot.slane %v157, 4
    %v164 = vadd.f32 %v156, %v160
    %v165 = vadd.f32 %v157, %v161
    %v166 = vld [vmem:[#allocation3] sm:$0xf]
    %v167 = vld [vmem:[#allocation3 + $0x4] sm:$0xf]
    %v168 = vadd.f32 %v166, %v164
    %v169 = vadd.f32 %v167, %v165
    %170 = vst [vmem:[#allocation3] sm:$0xf] %v168
    %171 = vst [vmem:[#allocation3 + $0x4] sm:$0xf] %v169
    %v172 = vld [vmem:[#allocation10] sm:$0xff]
    %v173 = vld [vmem:[#allocation10 + $0x8] sm:$0xff]
    %v176 = vrot.slane %v172, 4
    %v177 = vrot.slane %v173, 4
    %v180 = vadd.f32 %v172, %v176
    %v181 = vadd.f32 %v173, %v177
    %v182 = vld [vmem:[#allocation4] sm:$0xf]
    %v183 = vld [vmem:[#allocation4 + $0x4] sm:$0xf]
    %v184 = vadd.f32 %v182, %v180
    %v185 = vadd.f32 %v183, %v181
    %186 = vst [vmem:[#allocation4] sm:$0xf] %v184
    %187 = vst [vmem:[#allocation4 + $0x4] sm:$0xf] %v185
    // Predicated region
    $region78: #{tpu_custom_call.1} parent=1 // pred_check
      %p188 = pneg %p130
    $region79: #{tpu_custom_call.1} parent=1 // pred_check_branch
      %190 = sbr.rel (%p188) target = $region81
    $region80: #{tpu_custom_call.1} parent=1 // pred_region
      %v191 = vld [vmem:[#allocation2] sm:$0xf]
      %v192 = vld [vmem:[#allocation2 + $0x4] sm:$0xf]
      %vm193 = vcmask 1043456
      %v194 = vsel %vm193, %v191, 0.0
      %195 = vadd.xlane.f32.xlu0 %v194
      %v196 = vpop.xlane.xlu0 %195
      %v197 = vsel %vm193, %v192, 0.0
      %198 = vadd.xlane.f32.xlu0 %v197
      %v199 = vpop.xlane.xlu0 %198
      %v200 = vmul.f32 %v196, 0.00390625
      %v201 = vmul.f32 %v199, 0.00390625
      %v202 = vld [vmem:[#allocation3] sm:$0xf]
      %v203 = vld [vmem:[#allocation3 + $0x4] sm:$0xf]
      %v204 = vsel %vm193, %v202, 0.0
      %205 = vadd.xlane.f32.xlu0 %v204
      %v206 = vpop.xlane.xlu0 %205
      %v207 = vsel %vm193, %v203, 0.0
      %208 = vadd.xlane.f32.xlu0 %v207
      %v209 = vpop.xlane.xlu0 %208
      %v210 = vmul.f32 %v206, 0.00390625
      %v211 = vmul.f32 %v209, 0.00390625
      %v212 = vld [vmem:[#allocation4] sm:$0xf]
      %v213 = vld [vmem:[#allocation4 + $0x4] sm:$0xf]
      %v214 = vsel %vm193, %v212, 0.0
      %215 = vadd.xlane.f32.xlu0 %v214
      %v216 = vpop.xlane.xlu0 %215
      %v217 = vsel %vm193, %v213, 0.0
      %218 = vadd.xlane.f32.xlu0 %v217
      %v219 = vpop.xlane.xlu0 %218
      %v220 = vmul.f32 %v216, 0.00390625
      %v221 = vmul.f32 %v219, 0.00390625
      %v222 = vld [vmem:[#allocation11] sm:$0xff]
      %v223 = vld [vmem:[#allocation11 + $0x8] sm:$0xff]
      %v224 = vld [vmem:[#allocation13] sm:$0xf]
      %v226 = vlaneseq
      %v227 = vshrl.u32 %v226, 7
      %v228 = vsub.s32 0, %v227
      %v229 = vrot.slane %v224, %v228
      %v230 = vlaneseq
      %v231 = vshrl.u32 %v230, 7
      %v232 = vsub.s32 1, %v231
      %v233 = vrot.slane %v224, %v232
      %v234 = vlaneseq
      %v235 = vshrl.u32 %v234, 7
      %v236 = vsub.s32 2, %v235
      %v237 = vrot.slane %v224, %v236
      %v238 = vlaneseq
      %v239 = vshrl.u32 %v238, 7
      %v240 = vsub.s32 3, %v239
      %v241 = vrot.slane %v224, %v240
      %v248 = vlaneseq
      %v249 = vand.u32 %v248, 127
      %v250 = vlaneseq
      %v251 = vshrl.u32 %v250, 7
      %v252 = vsub.s32 %v249, %v251
      %v253 = vrot.slane %v200, %v252
      %v254 = vlaneseq
      %v255 = vshrl.u32 %v254, 7
      %v256 = vsub.s32 %v249, %v255
      %v257 = vrot.slane %v201, %v256
      %vm258 = vcmask 1041409
      %v259 = vsel %vm258, %v257, %v253
      %v262 = vcombine.high %v222, %v222
      %v263 = vcombine.high %v223, %v223
      %vm264 = vcmask 31744
      %v265 = vsel %vm264, %v259, 0
      %v267 = vsel %vm193, %v222, 0
      %v269 = vsel %vm193, %v262, 0
      %v271 = vsel %vm193, %v223, 0
      %v273 = vsel %vm193, %v263, 0
      %275 = vmatprep.subr.mxu0 %v269
      %276 = vmatpush1.msra.mxu0 %v267
      %277 = vmatprep.subr.mxu0 0.0
      %278 = vmatpush1.msra.mxu0 0.0
      %279 = vmatprep.subr.mxu0 0.0
      %280 = vmatpush1.msra.mxu0 0.0
      %281 = vmatprep.subr.mxu0 0.0
      %282 = vmatpush1.msra.mxu0 0.0
      %283 = vmatprep.subr.mxu0 0.0
      %284 = vmatpush1.msra.mxu0 0.0
      %285 = vmatprep.subr.mxu0 0.0
      %286 = vmatpush1.msra.mxu0 0.0
      %287 = vmatprep.subr.mxu0 0.0
      %288 = vmatpush1.msra.mxu0 0.0
      %289 = vmatprep.subr.mxu0 0.0
      %290 = vmatpush1.msra.mxu0 0.0
      %291 = vmatprep.subr.mxu0 0.0
      %292 = vmatpush1.msra.mxu0 0.0
      %293 = vmatprep.subr.mxu0 0.0
      %294 = vmatpush1.msra.mxu0 0.0
      %295 = vmatprep.subr.mxu0 0.0
      %296 = vmatpush1.msra.mxu0 0.0
      %297 = vmatprep.subr.mxu0 0.0
      %298 = vmatpush1.msra.mxu0 0.0
      %299 = vmatprep.subr.mxu0 0.0
      %300 = vmatpush1.msra.mxu0 0.0
      %301 = vmatprep.subr.mxu0 0.0
      %302 = vmatpush1.msra.mxu0 0.0
      %303 = vmatprep.subr.mxu0 0.0
      %304 = vmatpush1.msra.mxu0 0.0
      %305 = vmatprep.subr.mxu0 0.0
      %306 = vmatpush1.msra.mxu0 0.0
      %307 = vmatprep.subr.mxu0 0.0
      %308 = vmatpush1.msra.mxu0 0.0
      %309 = vmatprep.subr.mxu0 0.0
      %310 = vmatpush1.msra.mxu0 0.0
      %311 = vmatprep.subr.mxu0 0.0
      %312 = vmatpush1.msra.mxu0 0.0
      %313 = vmatprep.subr.mxu0 0.0
      %314 = vmatpush1.msra.mxu0 0.0
      %315 = vmatprep.subr.mxu0 0.0
      %316 = vmatpush1.msra.mxu0 0.0
      %317 = vmatprep.subr.mxu0 0.0
      %318 = vmatpush1.msra.mxu0 0.0
      %319 = vmatprep.subr.mxu0 0.0
      %320 = vmatpush1.msra.mxu0 0.0
      %321 = vmatprep.subr.mxu0 0.0
      %322 = vmatpush1.msra.mxu0 0.0
      %323 = vmatprep.subr.mxu0 0.0
      %324 = vmatpush1.msra.mxu0 0.0
      %325 = vmatprep.subr.mxu0 0.0
      %326 = vmatpush1.msra.mxu0 0.0
      %327 = vmatprep.subr.mxu0 0.0
      %328 = vmatpush1.msra.mxu0 0.0
      %329 = vmatprep.subr.mxu0 0.0
      %330 = vmatpush1.msra.mxu0 0.0
      %331 = vmatprep.subr.mxu0 0.0
      %332 = vmatpush1.msra.mxu0 0.0
      %333 = vmatprep.subr.mxu0 0.0
      %334 = vmatpush1.msra.mxu0 0.0
      %335 = vmatprep.subr.mxu0 0.0
      %336 = vmatpush1.msra.mxu0 0.0
      %337 = vmatprep.subr.mxu0 0.0
      %338 = vmatpush1.msra.mxu0 0.0
      %339 = vmatprep.mubr.f32.mxu0 0.0
      %340 = vmatmul.mubr.f32.gmra.mrb[0].mxu0 %v265
      %v341 = vpop.f32.mrb[0].mxu0
      %v342 = vadd.f32 %v229, %v341
      %v343 = vpop.f32.mrb[0].mxu0
      %v344 = vadd.f32 %v233, %v343
      %345 = vdwg.mxu0
      %346 = vmatprep.subr.mxu0 %v273
      %347 = vmatpush1.msra.mxu0 %v271
      %348 = vmatprep.subr.mxu0 0.0
      %349 = vmatpush1.msra.mxu0 0.0
      %350 = vmatprep.subr.mxu0 0.0
      %351 = vmatpush1.msra.mxu0 0.0
      %352 = vmatprep.subr.mxu0 0.0
      %353 = vmatpush1.msra.mxu0 0.0
      %354 = vmatprep.subr.mxu0 0.0
      %355 = vmatpush1.msra.mxu0 0.0
      %356 = vmatprep.subr.mxu0 0.0
      %357 = vmatpush1.msra.mxu0 0.0
      %358 = vmatprep.subr.mxu0 0.0
      %359 = vmatpush1.msra.mxu0 0.0
      %360 = vmatprep.subr.mxu0 0.0
      %361 = vmatpush1.msra.mxu0 0.0
      %362 = vmatprep.subr.mxu0 0.0
      %363 = vmatpush1.msra.mxu0 0.0
      %364 = vmatprep.subr.mxu0 0.0
      %365 = vmatpush1.msra.mxu0 0.0
      %366 = vmatprep.subr.mxu0 0.0
      %367 = vmatpush1.msra.mxu0 0.0
      %368 = vmatprep.subr.mxu0 0.0
      %369 = vmatpush1.msra.mxu0 0.0
      %370 = vmatprep.subr.mxu0 0.0
      %371 = vmatpush1.msra.mxu0 0.0
      %372 = vmatprep.subr.mxu0 0.0
      %373 = vmatpush1.msra.mxu0 0.0
      %374 = vmatprep.subr.mxu0 0.0
      %375 = vmatpush1.msra.mxu0 0.0
      %376 = vmatprep.subr.mxu0 0.0
      %377 = vmatpush1.msra.mxu0 0.0
      %378 = vmatprep.subr.mxu0 0.0
      %379 = vmatpush1.msra.mxu0 0.0
      %380 = vmatprep.subr.mxu0 0.0
      %381 = vmatpush1.msra.mxu0 0.0
      %382 = vmatprep.subr.mxu0 0.0
      %383 = vmatpush1.msra.mxu0 0.0
      %384 = vmatprep.subr.mxu0 0.0
      %385 = vmatpush1.msra.mxu0 0.0
      %386 = vmatprep.subr.mxu0 0.0
      %387 = vmatpush1.msra.mxu0 0.0
      %388 = vmatprep.subr.mxu0 0.0
      %389 = vmatpush1.msra.mxu0 0.0
      %390 = vmatprep.subr.mxu0 0.0
      %391 = vmatpush1.msra.mxu0 0.0
      %392 = vmatprep.subr.mxu0 0.0
      %393 = vmatpush1.msra.mxu0 0.0
      %394 = vmatprep.subr.mxu0 0.0
      %395 = vmatpush1.msra.mxu0 0.0
      %396 = vmatprep.subr.mxu0 0.0
      %397 = vmatpush1.msra.mxu0 0.0
      %398 = vmatprep.subr.mxu0 0.0
      %399 = vmatpush1.msra.mxu0 0.0
      %400 = vmatprep.subr.mxu0 0.0
      %401 = vmatpush1.msra.mxu0 0.0
      %402 = vmatprep.subr.mxu0 0.0
      %403 = vmatpush1.msra.mxu0 0.0
      %404 = vmatprep.subr.mxu0 0.0
      %405 = vmatpush1.msra.mxu0 0.0
      %406 = vmatprep.subr.mxu0 0.0
      %407 = vmatpush1.msra.mxu0 0.0
      %408 = vmatprep.subr.mxu0 0.0
      %409 = vmatpush1.msra.mxu0 0.0
      %410 = vmatprep.mubr.f32.mxu0 0.0
      %411 = vmatmul.mubr.f32.gmra.mrb[0].mxu0 %v265
      %v412 = vpop.f32.mrb[0].mxu0
      %v413 = vadd.f32 %v237, %v412
      %v414 = vpop.f32.mrb[0].mxu0
      %v415 = vadd.f32 %v241, %v414
      %416 = vdwg.mxu0
      %v417 = vld [vmem:[%s5] sm:$0xff]
      %v418 = vld [vmem:[%s5 + $0x8] sm:$0xff]
      %v419 = vld [vmem:[%s6] sm:$0xf]
      %v421 = vlaneseq
      %v422 = vshrl.u32 %v421, 7
      %v423 = vsub.s32 0, %v422
      %v424 = vrot.slane %v419, %v423
      %v425 = vlaneseq
      %v426 = vshrl.u32 %v425, 7
      %v427 = vsub.s32 1, %v426
      %v428 = vrot.slane %v419, %v427
      %v429 = vlaneseq
      %v430 = vshrl.u32 %v429, 7
      %v431 = vsub.s32 2, %v430
      %v432 = vrot.slane %v419, %v431
      %v433 = vlaneseq
      %v434 = vshrl.u32 %v433, 7
      %v435 = vsub.s32 3, %v434
      %v436 = vrot.slane %v419, %v435
      %v443 = vlaneseq
      %v444 = vshrl.u32 %v443, 7
      %v445 = vsub.s32 %v249, %v444
      %v446 = vrot.slane %v210, %v445
      %v447 = vlaneseq
      %v448 = vshrl.u32 %v447, 7
      %v449 = vsub.s32 %v249, %v448
      %v450 = vrot.slane %v211, %v449
      %v451 = vsel %vm258, %v450, %v446
      %v454 = vcombine.high %v417, %v417
      %v455 = vcombine.high %v418, %v418
      %v456 = vsel %vm264, %v451, 0
      %v458 = vsel %vm193, %v417, 0
      %v460 = vsel %vm193, %v454, 0
      %v462 = vsel %vm193, %v418, 0
      %v464 = vsel %vm193, %v455, 0
      %466 = vmatprep.subr.mxu0 %v460
      %467 = vmatpush1.msra.mxu0 %v458
      %468 = vmatprep.subr.mxu0 0.0
      %469 = vmatpush1.msra.mxu0 0.0
      %470 = vmatprep.subr.mxu0 0.0
      %471 = vmatpush1.msra.mxu0 0.0
      %472 = vmatprep.subr.mxu0 0.0
      %473 = vmatpush1.msra.mxu0 0.0
      %474 = vmatprep.subr.mxu0 0.0
      %475 = vmatpush1.msra.mxu0 0.0
      %476 = vmatprep.subr.mxu0 0.0
      %477 = vmatpush1.msra.mxu0 0.0
      %478 = vmatprep.subr.mxu0 0.0
      %479 = vmatpush1.msra.mxu0 0.0
      %480 = vmatprep.subr.mxu0 0.0
      %481 = vmatpush1.msra.mxu0 0.0
      %482 = vmatprep.subr.mxu0 0.0
      %483 = vmatpush1.msra.mxu0 0.0
      %484 = vmatprep.subr.mxu0 0.0
      %485 = vmatpush1.msra.mxu0 0.0
      %486 = vmatprep.subr.mxu0 0.0
      %487 = vmatpush1.msra.mxu0 0.0
      %488 = vmatprep.subr.mxu0 0.0
      %489 = vmatpush1.msra.mxu0 0.0
      %490 = vmatprep.subr.mxu0 0.0
      %491 = vmatpush1.msra.mxu0 0.0
      %492 = vmatprep.subr.mxu0 0.0
      %493 = vmatpush1.msra.mxu0 0.0
      %494 = vmatprep.subr.mxu0 0.0
      %495 = vmatpush1.msra.mxu0 0.0
      %496 = vmatprep.subr.mxu0 0.0
      %497 = vmatpush1.msra.mxu0 0.0
      %498 = vmatprep.subr.mxu0 0.0
      %499 = vmatpush1.msra.mxu0 0.0
      %500 = vmatprep.subr.mxu0 0.0
      %501 = vmatpush1.msra.mxu0 0.0
      %502 = vmatprep.subr.mxu0 0.0
      %503 = vmatpush1.msra.mxu0 0.0
      %504 = vmatprep.subr.mxu0 0.0
      %505 = vmatpush1.msra.mxu0 0.0
      %506 = vmatprep.subr.mxu0 0.0
      %507 = vmatpush1.msra.mxu0 0.0
      %508 = vmatprep.subr.mxu0 0.0
      %509 = vmatpush1.msra.mxu0 0.0
      %510 = vmatprep.subr.mxu0 0.0
      %511 = vmatpush1.msra.mxu0 0.0
      %512 = vmatprep.subr.mxu0 0.0
      %513 = vmatpush1.msra.mxu0 0.0
      %514 = vmatprep.subr.mxu0 0.0
      %515 = vmatpush1.msra.mxu0 0.0
      %516 = vmatprep.subr.mxu0 0.0
      %517 = vmatpush1.msra.mxu0 0.0
      %518 = vmatprep.subr.mxu0 0.0
      %519 = vmatpush1.msra.mxu0 0.0
      %520 = vmatprep.subr.mxu0 0.0
      %521 = vmatpush1.msra.mxu0 0.0
      %522 = vmatprep.subr.mxu0 0.0
      %523 = vmatpush1.msra.mxu0 0.0
      %524 = vmatprep.subr.mxu0 0.0
      %525 = vmatpush1.msra.mxu0 0.0
      %526 = vmatprep.subr.mxu0 0.0
      %527 = vmatpush1.msra.mxu0 0.0
      %528 = vmatprep.subr.mxu0 0.0
      %529 = vmatpush1.msra.mxu0 0.0
      %530 = vmatprep.mubr.f32.mxu0 0.0
      %531 = vmatmul.mubr.f32.gmra.mrb[0].mxu0 %v456
      %v532 = vpop.f32.mrb[0].mxu0
      %v533 = vadd.f32 %v424, %v532
      %v534 = vpop.f32.mrb[0].mxu0
      %v535 = vadd.f32 %v428, %v534
      %536 = vdwg.mxu0
      %537 = vmatprep.subr.mxu0 %v464
      %538 = vmatpush1.msra.mxu0 %v462
      %539 = vmatprep.subr.mxu0 0.0
      %540 = vmatpush1.msra.mxu0 0.0
      %541 = vmatprep.subr.mxu0 0.0
      %542 = vmatpush1.msra.mxu0 0.0
      %543 = vmatprep.subr.mxu0 0.0
      %544 = vmatpush1.msra.mxu0 0.0
      %545 = vmatprep.subr.mxu0 0.0
      %546 = vmatpush1.msra.mxu0 0.0
      %547 = vmatprep.subr.mxu0 0.0
      %548 = vmatpush1.msra.mxu0 0.0
      %549 = vmatprep.subr.mxu0 0.0
      %550 = vmatpush1.msra.mxu0 0.0
      %551 = vmatprep.subr.mxu0 0.0
      %552 = vmatpush1.msra.mxu0 0.0
      %553 = vmatprep.subr.mxu0 0.0
      %554 = vmatpush1.msra.mxu0 0.0
      %555 = vmatprep.subr.mxu0 0.0
      %556 = vmatpush1.msra.mxu0 0.0
      %557 = vmatprep.subr.mxu0 0.0
      %558 = vmatpush1.msra.mxu0 0.0
      %559 = vmatprep.subr.mxu0 0.0
      %560 = vmatpush1.msra.mxu0 0.0
      %561 = vmatprep.subr.mxu0 0.0
      %562 = vmatpush1.msra.mxu0 0.0
      %563 = vmatprep.subr.mxu0 0.0
      %564 = vmatpush1.msra.mxu0 0.0
      %565 = vmatprep.subr.mxu0 0.0
      %566 = vmatpush1.msra.mxu0 0.0
      %567 = vmatprep.subr.mxu0 0.0
      %568 = vmatpush1.msra.mxu0 0.0
      %569 = vmatprep.subr.mxu0 0.0
      %570 = vmatpush1.msra.mxu0 0.0
      %571 = vmatprep.subr.mxu0 0.0
      %572 = vmatpush1.msra.mxu0 0.0
      %573 = vmatprep.subr.mxu0 0.0
      %574 = vmatpush1.msra.mxu0 0.0
      %575 = vmatprep.subr.mxu0 0.0
      %576 = vmatpush1.msra.mxu0 0.0
      %577 = vmatprep.subr.mxu0 0.0
      %578 = vmatpush1.msra.mxu0 0.0
      %579 = vmatprep.subr.mxu0 0.0
      %580 = vmatpush1.msra.mxu0 0.0
      %581 = vmatprep.subr.mxu0 0.0
      %582 = vmatpush1.msra.mxu0 0.0
      %583 = vmatprep.subr.mxu0 0.0
      %584 = vmatpush1.msra.mxu0 0.0
      %585 = vmatprep.subr.mxu0 0.0
      %586 = vmatpush1.msra.mxu0 0.0
      %587 = vmatprep.subr.mxu0 0.0
      %588 = vmatpush1.msra.mxu0 0.0
      %589 = vmatprep.subr.mxu0 0.0
      %590 = vmatpush1.msra.mxu0 0.0
      %591 = vmatprep.subr.mxu0 0.0
      %592 = vmatpush1.msra.mxu0 0.0
      %593 = vmatprep.subr.mxu0 0.0
      %594 = vmatpush1.msra.mxu0 0.0
      %595 = vmatprep.subr.mxu0 0.0
      %596 = vmatpush1.msra.mxu0 0.0
      %597 = vmatprep.subr.mxu0 0.0
      %598 = vmatpush1.msra.mxu0 0.0
      %599 = vmatprep.subr.mxu0 0.0
      %600 = vmatpush1.msra.mxu0 0.0
      %601 = vmatprep.mubr.f32.mxu0 0.0
      %602 = vmatmul.mubr.f32.gmra.mrb[0].mxu0 %v456
      %v603 = vpop.f32.mrb[0].mxu0
      %v604 = vadd.f32 %v432, %v603
      %v605 = vpop.f32.mrb[0].mxu0
      %v606 = vadd.f32 %v436, %v605
      %607 = vdwg.mxu0
      %v608 = vld [vmem:[#allocation14] sm:$0xff]
      %v609 = vld [vmem:[#allocation14 + $0x8] sm:$0xff]
      %v610 = vld [vmem:[#allocation14 + $0x10] sm:$0xff]
      %v611 = vld [vmem:[#allocation14 + $0x18] sm:$0xff]
      %v612 = vld [vmem:[#allocation14 + $0x20] sm:$0xff]
      %v613 = vld [vmem:[#allocation14 + $0x28] sm:$0xff]
      %v614 = vld [vmem:[#allocation14 + $0x30] sm:$0xff]
      %v615 = vld [vmem:[#allocation14 + $0x38] sm:$0xff]
      %v616 = vld [vmem:[#allocation14 + $0x40] sm:$0xff]
      %v617 = vld [vmem:[#allocation14 + $0x48] sm:$0xff]
      %v618 = vld [vmem:[#allocation14 + $0x50] sm:$0xff]
      %v619 = vld [vmem:[#allocation14 + $0x58] sm:$0xff]
      %v620 = vld [vmem:[#allocation14 + $0x60] sm:$0xff]
      %v621 = vld [vmem:[#allocation14 + $0x68] sm:$0xff]
      %v622 = vld [vmem:[#allocation14 + $0x70] sm:$0xff]
      %v623 = vld [vmem:[#allocation14 + $0x78] sm:$0xff]
      %v624 = vld [vmem:[#allocation14 + $0x80] sm:$0xff]
      %v625 = vld [vmem:[#allocation14 + $0x88] sm:$0xff]
      %v626 = vld [vmem:[#allocation14 + $0x90] sm:$0xff]
      %v627 = vld [vmem:[#allocation14 + $0x98] sm:$0xff]
      %v628 = vld [vmem:[#allocation14 + $0xa0] sm:$0xff]
      %v629 = vld [vmem:[#allocation14 + $0xa8] sm:$0xff]
      %v630 = vld [vmem:[#allocation14 + $0xb0] sm:$0xff]
      %v631 = vld [vmem:[#allocation14 + $0xb8] sm:$0xff]
      %v632 = vld [vmem:[#allocation14 + $0xc0] sm:$0xff]
      %v633 = vld [vmem:[#allocation14 + $0xc8] sm:$0xff]
      %v634 = vld [vmem:[#allocation14 + $0xd0] sm:$0xff]
      %v635 = vld [vmem:[#allocation14 + $0xd8] sm:$0xff]
      %v636 = vld [vmem:[#allocation14 + $0xe0] sm:$0xff]
      %v637 = vld [vmem:[#allocation14 + $0xe8] sm:$0xff]
      %v638 = vld [vmem:[#allocation14 + $0xf0] sm:$0xff]
      %v639 = vld [vmem:[#allocation14 + $0xf8] sm:$0xff]
      %v640 = vld [vmem:[#allocation14 + $0x100] sm:$0xff]
      %v641 = vld [vmem:[#allocation14 + $0x108] sm:$0xff]
      %v642 = vld [vmem:[#allocation14 + $0x110] sm:$0xff]
      %v643 = vld [vmem:[#allocation14 + $0x118] sm:$0xff]
      %v644 = vld [vmem:[#allocation14 + $0x120] sm:$0xff]
      %v645 = vld [vmem:[#allocation14 + $0x128] sm:$0xff]
      %v646 = vld [vmem:[#allocation14 + $0x130] sm:$0xff]
      %v647 = vld [vmem:[#allocation14 + $0x138] sm:$0xff]
      %v648 = vld [vmem:[#allocation14 + $0x140] sm:$0xff]
      %v649 = vld [vmem:[#allocation14 + $0x148] sm:$0xff]
      %v650 = vld [vmem:[#allocation14 + $0x150] sm:$0xff]
      %v651 = vld [vmem:[#allocation14 + $0x158] sm:$0xff]
      %v652 = vld [vmem:[#allocation14 + $0x160] sm:$0xff]
      %v653 = vld [vmem:[#allocation14 + $0x168] sm:$0xff]
      %v654 = vld [vmem:[#allocation14 + $0x170] sm:$0xff]
      %v655 = vld [vmem:[#allocation14 + $0x178] sm:$0xff]
      %v656 = vld [vmem:[#allocation14 + $0x180] sm:$0xff]
      %v657 = vld [vmem:[#allocation14 + $0x188] sm:$0xff]
      %v658 = vld [vmem:[#allocation14 + $0x190] sm:$0xff]
      %v659 = vld [vmem:[#allocation14 + $0x198] sm:$0xff]
      %v660 = vld [vmem:[#allocation14 + $0x1a0] sm:$0xff]
      %v661 = vld [vmem:[#allocation14 + $0x1a8] sm:$0xff]
      %v662 = vld [vmem:[#allocation14 + $0x1b0] sm:$0xff]
      %v663 = vld [vmem:[#allocation14 + $0x1b8] sm:$0xff]
      %v664 = vld [vmem:[#allocation14 + $0x1c0] sm:$0xff]
      %v665 = vld [vmem:[#allocation14 + $0x1c8] sm:$0xff]
      %v666 = vld [vmem:[#allocation14 + $0x1d0] sm:$0xff]
      %v667 = vld [vmem:[#allocation14 + $0x1d8] sm:$0xff]
      %v668 = vld [vmem:[#allocation14 + $0x1e0] sm:$0xff]
      %v669 = vld [vmem:[#allocation14 + $0x1e8] sm:$0xff]
      %v670 = vld [vmem:[#allocation14 + $0x1f0] sm:$0xff]
      %v671 = vld [vmem:[#allocation14 + $0x1f8] sm:$0xff]
      %v672 = vld [vmem:[#allocation16] sm:$0xff]
      %v673 = vld [vmem:[#allocation16 + $0x8] sm:$0xff]
      %v674 = vld [vmem:[#allocation16 + $0x10] sm:$0xff]
      %v675 = vld [vmem:[#allocation16 + $0x18] sm:$0xff]
      %v676 = vld [vmem:[#allocation16 + $0x20] sm:$0xff]
      %v677 = vld [vmem:[#allocation16 + $0x28] sm:$0xff]
      %v678 = vld [vmem:[#allocation16 + $0x30] sm:$0xff]
      %v679 = vld [vmem:[#allocation16 + $0x38] sm:$0xff]
      %v680 = vld [vmem:[#allocation16 + $0x40] sm:$0xff]
      %v681 = vld [vmem:[#allocation16 + $0x48] sm:$0xff]
      %v682 = vld [vmem:[#allocation16 + $0x50] sm:$0xff]
      %v683 = vld [vmem:[#allocation16 + $0x58] sm:$0xff]
      %v684 = vld [vmem:[#allocation16 + $0x60] sm:$0xff]
      %v685 = vld [vmem:[#allocation16 + $0x68] sm:$0xff]
      %v686 = vld [vmem:[#allocation16 + $0x70] sm:$0xff]
      %v687 = vld [vmem:[#allocation16 + $0x78] sm:$0xff]
      %v688 = vld [vmem:[#allocation16 + $0x80] sm:$0xff]
      %v689 = vld [vmem:[#allocation16 + $0x88] sm:$0xff]
      %v690 = vld [vmem:[#allocation16 + $0x90] sm:$0xff]
      %v691 = vld [vmem:[#allocation16 + $0x98] sm:$0xff]
      %v692 = vld [vmem:[#allocation16 + $0xa0] sm:$0xff]
      %v693 = vld [vmem:[#allocation16 + $0xa8] sm:$0xff]
      %v694 = vld [vmem:[#allocation16 + $0xb0] sm:$0xff]
      %v695 = vld [vmem:[#allocation16 + $0xb8] sm:$0xff]
      %v696 = vld [vmem:[#allocation16 + $0xc0] sm:$0xff]
      %v697 = vld [vmem:[#allocation16 + $0xc8] sm:$0xff]
      %v698 = vld [vmem:[#allocation16 + $0xd0] sm:$0xff]
      %v699 = vld [vmem:[#allocation16 + $0xd8] sm:$0xff]
      %v700 = vld [vmem:[#allocation16 + $0xe0] sm:$0xff]
      %v701 = vld [vmem:[#allocation16 + $0xe8] sm:$0xff]
      %v702 = vld [vmem:[#allocation16 + $0xf0] sm:$0xff]
      %v703 = vld [vmem:[#allocation16 + $0xf8] sm:$0xff]
      %v704 = vld [vmem:[#allocation16 + $0x100] sm:$0xff]
      %v705 = vld [vmem:[#allocation16 + $0x108] sm:$0xff]
      %v706 = vld [vmem:[#allocation16 + $0x110] sm:$0xff]
      %v707 = vld [vmem:[#allocation16 + $0x118] sm:$0xff]
      %v708 = vld [vmem:[#allocation16 + $0x120] sm:$0xff]
      %v709 = vld [vmem:[#allocation16 + $0x128] sm:$0xff]
      %v710 = vld [vmem:[#allocation16 + $0x130] sm:$0xff]
      %v711 = vld [vmem:[#allocation16 + $0x138] sm:$0xff]
      %v712 = vld [vmem:[#allocation16 + $0x140] sm:$0xff]
      %v713 = vld [vmem:[#allocation16 + $0x148] sm:$0xff]
      %v714 = vld [vmem:[#allocation16 + $0x150] sm:$0xff]
      %v715 = vld [vmem:[#allocation16 + $0x158] sm:$0xff]
      %v716 = vld [vmem:[#allocation16 + $0x160] sm:$0xff]
      %v717 = vld [vmem:[#allocation16 + $0x168] sm:$0xff]
      %v718 = vld [vmem:[#allocation16 + $0x170] sm:$0xff]
      %v719 = vld [vmem:[#allocation16 + $0x178] sm:$0xff]
      %v720 = vld [vmem:[#allocation16 + $0x180] sm:$0xff]
      %v721 = vld [vmem:[#allocation16 + $0x188] sm:$0xff]
      %v722 = vld [vmem:[#allocation16 + $0x190] sm:$0xff]
      %v723 = vld [vmem:[#allocation16 + $0x198] sm:$0xff]
      %v724 = vld [vmem:[#allocation16 + $0x1a0] sm:$0xff]
      %v725 = vld [vmem:[#allocation16 + $0x1a8] sm:$0xff]
      %v726 = vld [vmem:[#allocation16 + $0x1b0] sm:$0xff]
      %v727 = vld [vmem:[#allocation16 + $0x1b8] sm:$0xff]
      %v728 = vld [vmem:[#allocation16 + $0x1c0] sm:$0xff]
      %v729 = vld [vmem:[#allocation16 + $0x1c8] sm:$0xff]
      %v730 = vld [vmem:[#allocation16 + $0x1d0] sm:$0xff]
      %v731 = vld [vmem:[#allocation16 + $0x1d8] sm:$0xff]
      %v732 = vld [vmem:[#allocation16 + $0x1e0] sm:$0xff]
      %v733 = vld [vmem:[#allocation16 + $0x1e8] sm:$0xff]
      %v734 = vld [vmem:[#allocation16 + $0x1f0] sm:$0xff]
      %v735 = vld [vmem:[#allocation16 + $0x1f8] sm:$0xff]
      %736 = vmatprep.subr.mxu0 0.0
      %737 = vmatpush1.msra.mxu0 %v672
      %738 = vmatprep.subr.mxu0 0.0
      %739 = vmatpush1.msra.mxu0 %v673
      %740 = vmatprep.subr.mxu0 0.0
      %741 = vmatpush1.msra.mxu0 %v674
      %742 = vmatprep.subr.mxu0 0.0
      %743 = vmatpush1.msra.mxu0 %v675
      %744 = vmatprep.subr.mxu0 0.0
      %745 = vmatpush1.msra.mxu0 %v676
      %746 = vmatprep.subr.mxu0 0.0
      %747 = vmatpush1.msra.mxu0 %v677
      %748 = vmatprep.subr.mxu0 0.0
      %749 = vmatpush1.msra.mxu0 %v678
      %750 = vmatprep.subr.mxu0 0.0
      %751 = vmatpush1.msra.mxu0 %v679
      %752 = vmatprep.subr.mxu0 0.0
      %753 = vmatpush1.msra.mxu0 %v680
      %754 = vmatprep.subr.mxu0 0.0
      %755 = vmatpush1.msra.mxu0 %v681
      %756 = vmatprep.subr.mxu0 0.0
      %757 = vmatpush1.msra.mxu0 %v682
      %758 = vmatprep.subr.mxu0 0.0
      %759 = vmatpush1.msra.mxu0 %v683
      %760 = vmatprep.subr.mxu0 0.0
      %761 = vmatpush1.msra.mxu0 %v684
      %762 = vmatprep.subr.mxu0 0.0
      %763 = vmatpush1.msra.mxu0 %v685
      %764 = vmatprep.subr.mxu0 0.0
      %765 = vmatpush1.msra.mxu0 %v686
      %766 = vmatprep.subr.mxu0 0.0
      %767 = vmatpush1.msra.mxu0 %v687
      %768 = vmatprep.subr.mxu0 0.0
      %769 = vmatpush1.msra.mxu0 %v688
      %770 = vmatprep.subr.mxu0 0.0
      %771 = vmatpush1.msra.mxu0 %v689
      %772 = vmatprep.subr.mxu0 0.0
      %773 = vmatpush1.msra.mxu0 %v690
      %774 = vmatprep.subr.mxu0 0.0
      %775 = vmatpush1.msra.mxu0 %v691
      %776 = vmatprep.subr.mxu0 0.0
      %777 = vmatpush1.msra.mxu0 %v692
      %778 = vmatprep.subr.mxu0 0.0
      %779 = vmatpush1.msra.mxu0 %v693
      %780 = vmatprep.subr.mxu0 0.0
      %781 = vmatpush1.msra.mxu0 %v694
      %782 = vmatprep.subr.mxu0 0.0
      %783 = vmatpush1.msra.mxu0 %v695
      %784 = vmatprep.subr.mxu0 0.0
      %785 = vmatpush1.msra.mxu0 %v696
      %786 = vmatprep.subr.mxu0 0.0
      %787 = vmatpush1.msra.mxu0 %v697
      %788 = vmatprep.subr.mxu0 0.0
      %789 = vmatpush1.msra.mxu0 %v698
      %790 = vmatprep.subr.mxu0 0.0
      %791 = vmatpush1.msra.mxu0 %v699
      %792 = vmatprep.subr.mxu0 0.0
      %793 = vmatpush1.msra.mxu0 %v700
      %794 = vmatprep.subr.mxu0 0.0
      %795 = vmatpush1.msra.mxu0 %v701
      %796 = vmatprep.subr.mxu0 0.0
      %797 = vmatpush1.msra.mxu0 %v702
      %798 = vmatprep.subr.mxu0 0.0
      %799 = vmatpush1.msra.mxu0 %v703
      %800 = vmatprep.mubr.f32.mxu0 %v535
      %801 = vmatmul.mubr.f32.gmra.mrb[0].mxu0 %v533
      %v802 = vpop.f32.mrb[0].mxu0
      %v803 = vadd.f32 0.0, %v802
      %v804 = vpop.f32.mrb[0].mxu0
      %805 = vdwg.mxu0
      %806 = vmatprep.subr.mxu0 0.0
      %807 = vmatpush1.msra.mxu0 %v704
      %808 = vmatprep.subr.mxu0 0.0
      %809 = vmatpush1.msra.mxu0 %v705
      %810 = vmatprep.subr.mxu0 0.0
      %811 = vmatpush1.msra.mxu0 %v706
      %812 = vmatprep.subr.mxu0 0.0
      %813 = vmatpush1.msra.mxu0 %v707
      %814 = vmatprep.subr.mxu0 0.0
      %815 = vmatpush1.msra.mxu0 %v708
      %816 = vmatprep.subr.mxu0 0.0
      %817 = vmatpush1.msra.mxu0 %v709
      %818 = vmatprep.subr.mxu0 0.0
      %819 = vmatpush1.msra.mxu0 %v710
      %820 = vmatprep.subr.mxu0 0.0
      %821 = vmatpush1.msra.mxu0 %v711
      %822 = vmatprep.subr.mxu0 0.0
      %823 = vmatpush1.msra.mxu0 %v712
      %824 = vmatprep.subr.mxu0 0.0
      %825 = vmatpush1.msra.mxu0 %v713
      %826 = vmatprep.subr.mxu0 0.0
      %827 = vmatpush1.msra.mxu0 %v714
      %828 = vmatprep.subr.mxu0 0.0
      %829 = vmatpush1.msra.mxu0 %v715
      %830 = vmatprep.subr.mxu0 0.0
      %831 = vmatpush1.msra.mxu0 %v716
      %832 = vmatprep.subr.mxu0 0.0
      %833 = vmatpush1.msra.mxu0 %v717
      %834 = vmatprep.subr.mxu0 0.0
      %835 = vmatpush1.msra.mxu0 %v718
      %836 = vmatprep.subr.mxu0 0.0
      %837 = vmatpush1.msra.mxu0 %v719
      %838 = vmatprep.subr.mxu0 0.0
      %839 = vmatpush1.msra.mxu0 %v720
      %840 = vmatprep.subr.mxu0 0.0
      %841 = vmatpush1.msra.mxu0 %v721
      %842 = vmatprep.subr.mxu0 0.0
      %843 = vmatpush1.msra.mxu0 %v722
      %844 = vmatprep.subr.mxu0 0.0
      %845 = vmatpush1.msra.mxu0 %v723
      %846 = vmatprep.subr.mxu0 0.0
      %847 = vmatpush1.msra.mxu0 %v724
      %848 = vmatprep.subr.mxu0 0.0
      %849 = vmatpush1.msra.mxu0 %v725
      %850 = vmatprep.subr.mxu0 0.0
      %851 = vmatpush1.msra.mxu0 %v726
      %852 = vmatprep.subr.mxu0 0.0
      %853 = vmatpush1.msra.mxu0 %v727
      %854 = vmatprep.subr.mxu0 0.0
      %855 = vmatpush1.msra.mxu0 %v728
      %856 = vmatprep.subr.mxu0 0.0
      %857 = vmatpush1.msra.mxu0 %v729
      %858 = vmatprep.subr.mxu0 0.0
      %859 = vmatpush1.msra.mxu0 %v730
      %860 = vmatprep.subr.mxu0 0.0
      %861 = vmatpush1.msra.mxu0 %v731
      %862 = vmatprep.subr.mxu0 0.0
      %863 = vmatpush1.msra.mxu0 %v732
      %864 = vmatprep.subr.mxu0 0.0
      %865 = vmatpush1.msra.mxu0 %v733
      %866 = vmatprep.subr.mxu0 0.0
      %867 = vmatpush1.msra.mxu0 %v734
      %868 = vmatprep.subr.mxu0 0.0
      %869 = vmatpush1.msra.mxu0 %v735
      %870 = vmatprep.mubr.f32.mxu0 %v606
      %871 = vmatmul.mubr.f32.gmra.mrb[0].mxu0 %v604
      %v872 = vpop.f32.mrb[0].mxu0
      %v873 = vadd.f32 %v803, %v872
      %v874 = vpop.f32.mrb[0].mxu0
      %875 = vdwg.mxu0
      %876 = vmatprep.subr.mxu0 0.0
      %877 = vmatpush1.msra.mxu0 %v608
      %878 = vmatprep.subr.mxu0 0.0
      %879 = vmatpush1.msra.mxu0 %v609
      %880 = vmatprep.subr.mxu0 0.0
      %881 = vmatpush1.msra.mxu0 %v610
      %882 = vmatprep.subr.mxu0 0.0
      %883 = vmatpush1.msra.mxu0 %v611
      %884 = vmatprep.subr.mxu0 0.0
      %885 = vmatpush1.msra.mxu0 %v612
      %886 = vmatprep.subr.mxu0 0.0
      %887 = vmatpush1.msra.mxu0 %v613
      %888 = vmatprep.subr.mxu0 0.0
      %889 = vmatpush1.msra.mxu0 %v614
      %890 = vmatprep.subr.mxu0 0.0
      %891 = vmatpush1.msra.mxu0 %v615
      %892 = vmatprep.subr.mxu0 0.0
      %893 = vmatpush1.msra.mxu0 %v616
      %894 = vmatprep.subr.mxu0 0.0
      %895 = vmatpush1.msra.mxu0 %v617
      %896 = vmatprep.subr.mxu0 0.0
      %897 = vmatpush1.msra.mxu0 %v618
      %898 = vmatprep.subr.mxu0 0.0
      %899 = vmatpush1.msra.mxu0 %v619
      %900 = vmatprep.subr.mxu0 0.0
      %901 = vmatpush1.msra.mxu0 %v620
      %902 = vmatprep.subr.mxu0 0.0
      %903 = vmatpush1.msra.mxu0 %v621
      %904 = vmatprep.subr.mxu0 0.0
      %905 = vmatpush1.msra.mxu0 %v622
      %906 = vmatprep.subr.mxu0 0.0
      %907 = vmatpush1.msra.mxu0 %v623
      %908 = vmatprep.subr.mxu0 0.0
      %909 = vmatpush1.msra.mxu0 %v624
      %910 = vmatprep.subr.mxu0 0.0
      %911 = vmatpush1.msra.mxu0 %v625
      %912 = vmatprep.subr.mxu0 0.0
      %913 = vmatpush1.msra.mxu0 %v626
      %914 = vmatprep.subr.mxu0 0.0
      %915 = vmatpush1.msra.mxu0 %v627
      %916 = vmatprep.subr.mxu0 0.0
      %917 = vmatpush1.msra.mxu0 %v628
      %918 = vmatprep.subr.mxu0 0.0
      %919 = vmatpush1.msra.mxu0 %v629
      %920 = vmatprep.subr.mxu0 0.0
      %921 = vmatpush1.msra.mxu0 %v630
      %922 = vmatprep.subr.mxu0 0.0
      %923 = vmatpush1.msra.mxu0 %v631
      %924 = vmatprep.subr.mxu0 0.0
      %925 = vmatpush1.msra.mxu0 %v632
      %926 = vmatprep.subr.mxu0 0.0
      %927 = vmatpush1.msra.mxu0 %v633
      %928 = vmatprep.subr.mxu0 0.0
      %929 = vmatpush1.msra.mxu0 %v634
      %930 = vmatprep.subr.mxu0 0.0
      %931 = vmatpush1.msra.mxu0 %v635
      %932 = vmatprep.subr.mxu0 0.0
      %933 = vmatpush1.msra.mxu0 %v636
      %934 = vmatprep.subr.mxu0 0.0
      %935 = vmatpush1.msra.mxu0 %v637
      %936 = vmatprep.subr.mxu0 0.0
      %937 = vmatpush1.msra.mxu0 %v638
      %938 = vmatprep.subr.mxu0 0.0
      %939 = vmatpush1.msra.mxu0 %v639
      %940 = vmatprep.mubr.f32.mxu0 %v344
      %941 = vmatmul.mubr.f32.gmra.mrb[0].mxu0 %v342
      %v942 = vpop.f32.mrb[0].mxu0
      %v943 = vadd.f32 %v873, %v942
      %v944 = vpop.f32.mrb[0].mxu0
      %945 = vdwg.mxu0
      %946 = vmatprep.subr.mxu0 0.0
      %947 = vmatpush1.msra.mxu0 %v640
      %948 = vmatprep.subr.mxu0 0.0
      %949 = vmatpush1.msra.mxu0 %v641
      %950 = vmatprep.subr.mxu0 0.0
      %951 = vmatpush1.msra.mxu0 %v642
      %952 = vmatprep.subr.mxu0 0.0
      %953 = vmatpush1.msra.mxu0 %v643
      %954 = vmatprep.subr.mxu0 0.0
      %955 = vmatpush1.msra.mxu0 %v644
      %956 = vmatprep.subr.mxu0 0.0
      %957 = vmatpush1.msra.mxu0 %v645
      %958 = vmatprep.subr.mxu0 0.0
      %959 = vmatpush1.msra.mxu0 %v646
      %960 = vmatprep.subr.mxu0 0.0
      %961 = vmatpush1.msra.mxu0 %v647
      %962 = vmatprep.subr.mxu0 0.0
      %963 = vmatpush1.msra.mxu0 %v648
      %964 = vmatprep.subr.mxu0 0.0
      %965 = vmatpush1.msra.mxu0 %v649
      %966 = vmatprep.subr.mxu0 0.0
      %967 = vmatpush1.msra.mxu0 %v650
      %968 = vmatprep.subr.mxu0 0.0
      %969 = vmatpush1.msra.mxu0 %v651
      %970 = vmatprep.subr.mxu0 0.0
      %971 = vmatpush1.msra.mxu0 %v652
      %972 = vmatprep.subr.mxu0 0.0
      %973 = vmatpush1.msra.mxu0 %v653
      %974 = vmatprep.subr.mxu0 0.0
      %975 = vmatpush1.msra.mxu0 %v654
      %976 = vmatprep.subr.mxu0 0.0
      %977 = vmatpush1.msra.mxu0 %v655
      %978 = vmatprep.subr.mxu0 0.0
      %979 = vmatpush1.msra.mxu0 %v656
      %980 = vmatprep.subr.mxu0 0.0
      %981 = vmatpush1.msra.mxu0 %v657
      %982 = vmatprep.subr.mxu0 0.0
      %983 = vmatpush1.msra.mxu0 %v658
      %984 = vmatprep.subr.mxu0 0.0
      %985 = vmatpush1.msra.mxu0 %v659
      %986 = vmatprep.subr.mxu0 0.0
      %987 = vmatpush1.msra.mxu0 %v660
      %988 = vmatprep.subr.mxu0 0.0
      %989 = vmatpush1.msra.mxu0 %v661
      %990 = vmatprep.subr.mxu0 0.0
      %991 = vmatpush1.msra.mxu0 %v662
      %992 = vmatprep.subr.mxu0 0.0
      %993 = vmatpush1.msra.mxu0 %v663
      %994 = vmatprep.subr.mxu0 0.0
      %995 = vmatpush1.msra.mxu0 %v664
      %996 = vmatprep.subr.mxu0 0.0
      %997 = vmatpush1.msra.mxu0 %v665
      %998 = vmatprep.subr.mxu0 0.0
      %999 = vmatpush1.msra.mxu0 %v666
      %1000 = vmatprep.subr.mxu0 0.0
      %1001 = vmatpush1.msra.mxu0 %v667
      %1002 = vmatprep.subr.mxu0 0.0
      %1003 = vmatpush1.msra.mxu0 %v668
      %1004 = vmatprep.subr.mxu0 0.0
      %1005 = vmatpush1.msra.mxu0 %v669
      %1006 = vmatprep.subr.mxu0 0.0
      %1007 = vmatpush1.msra.mxu0 %v670
      %1008 = vmatprep.subr.mxu0 0.0
      %1009 = vmatpush1.msra.mxu0 %v671
      %1010 = vmatprep.mubr.f32.mxu0 %v415
      %1011 = vmatmul.mubr.f32.gmra.mrb[0].mxu0 %v413
      %v1012 = vpop.f32.mrb[0].mxu0
      %v1013 = vadd.f32 %v943, %v1012
      %v1014 = vpop.f32.mrb[0].mxu0
      %1015 = vdwg.mxu0
      %v1016 = vld [vmem:[%s7] sm:$0xf]
      %v1019 = vlaneseq
      %v1020 = vshrl.u32 %v1019, 7
      %v1021 = vsub.s32 %v249, %v1020
      %v1022 = vrot.slane %v220, %v1021
      %v1023 = vlaneseq
      %v1024 = vshrl.u32 %v1023, 7
      %v1025 = vsub.s32 %v249, %v1024
      %v1026 = vrot.slane %v221, %v1025
      %v1027 = vsel %vm258, %v1026, %v1022
      %v1028 = vsel %vm264, %v1027, 0
      %v1031 = vsel %vm193, %v1016, 0
      %1033 = vmatprep.subr.mxu0 0.0
      %1034 = vmatpush1.msra.mxu0 %v1031
      %1035 = vmatprep.subr.mxu0 0.0
      %1036 = vmatpush1.msra.mxu0 0.0
      %1037 = vmatprep.subr.mxu0 0.0
      %1038 = vmatpush1.msra.mxu0 0.0
      %1039 = vmatprep.subr.mxu0 0.0
      %1040 = vmatpush1.msra.mxu0 0.0
      %1041 = vmatprep.subr.mxu0 0.0
      %1042 = vmatpush1.msra.mxu0 0.0
      %1043 = vmatprep.subr.mxu0 0.0
      %1044 = vmatpush1.msra.mxu0 0.0
      %1045 = vmatprep.subr.mxu0 0.0
      %1046 = vmatpush1.msra.mxu0 0.0
      %1047 = vmatprep.subr.mxu0 0.0
      %1048 = vmatpush1.msra.mxu0 0.0
      %1049 = vmatprep.subr.mxu0 0.0
      %1050 = vmatpush1.msra.mxu0 0.0
      %1051 = vmatprep.subr.mxu0 0.0
      %1052 = vmatpush1.msra.mxu0 0.0
      %1053 = vmatprep.subr.mxu0 0.0
      %1054 = vmatpush1.msra.mxu0 0.0
      %1055 = vmatprep.subr.mxu0 0.0
      %1056 = vmatpush1.msra.mxu0 0.0
      %1057 = vmatprep.subr.mxu0 0.0
      %1058 = vmatpush1.msra.mxu0 0.0
      %1059 = vmatprep.subr.mxu0 0.0
      %1060 = vmatpush1.msra.mxu0 0.0
      %1061 = vmatprep.subr.mxu0 0.0
      %1062 = vmatpush1.msra.mxu0 0.0
      %1063 = vmatprep.subr.mxu0 0.0
      %1064 = vmatpush1.msra.mxu0 0.0
      %1065 = vmatprep.subr.mxu0 0.0
      %1066 = vmatpush1.msra.mxu0 0.0
      %1067 = vmatprep.subr.mxu0 0.0
      %1068 = vmatpush1.msra.mxu0 0.0
      %1069 = vmatprep.subr.mxu0 0.0
      %1070 = vmatpush1.msra.mxu0 0.0
      %1071 = vmatprep.subr.mxu0 0.0
      %1072 = vmatpush1.msra.mxu0 0.0
      %1073 = vmatprep.subr.mxu0 0.0
      %1074 = vmatpush1.msra.mxu0 0.0
      %1075 = vmatprep.subr.mxu0 0.0
      %1076 = vmatpush1.msra.mxu0 0.0
      %1077 = vmatprep.subr.mxu0 0.0
      %1078 = vmatpush1.msra.mxu0 0.0
      %1079 = vmatprep.subr.mxu0 0.0
      %1080 = vmatpush1.msra.mxu0 0.0
      %1081 = vmatprep.subr.mxu0 0.0
      %1082 = vmatpush1.msra.mxu0 0.0
      %1083 = vmatprep.subr.mxu0 0.0
      %1084 = vmatpush1.msra.mxu0 0.0
      %1085 = vmatprep.subr.mxu0 0.0
      %1086 = vmatpush1.msra.mxu0 0.0
      %1087 = vmatprep.subr.mxu0 0.0
      %1088 = vmatpush1.msra.mxu0 0.0
      %1089 = vmatprep.subr.mxu0 0.0
      %1090 = vmatpush1.msra.mxu0 0.0
      %1091 = vmatprep.subr.mxu0 0.0
      %1092 = vmatpush1.msra.mxu0 0.0
      %1093 = vmatprep.subr.mxu0 0.0
      %1094 = vmatpush1.msra.mxu0 0.0
      %1095 = vmatprep.subr.mxu0 0.0
      %1096 = vmatpush1.msra.mxu0 0.0
      %1097 = vmatprep.mubr.f32.mxu0 0.0
      %1098 = vmatmul.mubr.f32.gmra.mrb[0].mxu0 %v1028
      %v1099 = vpop.f32.mrb[0].mxu0
      %v1100 = vadd.f32 0.0, %v1099
      %v1101 = vpop.f32.mrb[0].mxu0
      %1102 = vdwg.mxu0
      %v1103 = vadd.f32 %v1013, %v1100
      %v1104 = vld [vmem:[%s10] sm:$0x1]
      %v1106 = vlaneseq
      %v1107 = vshrl.u32 %v1106, 7
      %v1108 = vsub.s32 0, %v1107
      %v1109 = vrot.slane %v1104, %v1108
      %v1111 = vadd.f32 %v1103, %v1109
      %1112 = vst [vmem:[#allocation17] sm:$0x3] %v1111
    $region81: #{tpu_custom_call.1} parent=1 // pred_fallthru
      _
    // Predicated region
    $region82: #{tpu_custom_call.1} parent=1 // pred_check
      _
    $region83: #{tpu_custom_call.1} parent=1 // pred_check_branch
      %1114 = sbr.rel (0) target = $region85
    $region84: #{tpu_custom_call.1} parent=1 // pred_region
      %s1116 = ssub.s32 32, 32
      %1117 = vsyncadd [#allocation7], %s1116
      %s1119 = sshll.u32 [#allocation17], 4
      %s1120 = int_to_ptr.vmem [resolvable:$true] %s1119
      %1122 = dma.vmem_to_hbm [thread:$0]  %s1120, 32, %s11, [#allocation7]
    $region85: #{tpu_custom_call.1} parent=1 // pred_fallthru
      _
    // Predicated region
    $region86: #{tpu_custom_call.1} parent=1 // pred_check
      _
    $region87: #{tpu_custom_call.1} parent=1 // pred_check_branch
      %1124 = sbr.rel (0) target = $region89
    $region88: #{tpu_custom_call.1} parent=1 // pred_region
      %1125 = dma.done [#allocation7], 32
    $region89: #{tpu_custom_call.1} parent=1 // pred_fallthru
      _
    %1126 = vsyncpa [#allocation6], 1
    %1127 = vsyncpa [#allocation9], 1
    %1128 = vsyncpa [#allocation12], 1
    %1129 = vsyncpa [#allocation15], 1
    %1130 = vsyncpa [#allocation7], 1

</llo_original>
